<compile_context>
chip_gen: v6e
topology: v6e:2x2x1
jax: 0.10.0
libtpu: 0.0.40
codegen_flags: <defaults>
</compile_context>

<pallas_src>
import functools

import jax
import jax.numpy as jnp
from jax.experimental import pallas as pl
from jax.experimental.pallas import tpu as pltpu


def _round_up(x, m):
    return (x + m - 1) // m * m


def _pick_v_tile(vp):
    # 256-multiples match the v6e/v7x 2x256 MXU; 128 matches v5e. vp is a 128-multiple.
    for tv in (512, 256, 128):
        if vp % tv == 0:
            return tv
    return vp


# --------------------------------------------------------------------------------------
# Kernel 1: GRU + attention + concat (once) and tiled output projection (per grid step)
# --------------------------------------------------------------------------------------
def _decoder_core_kernel(emb_ref, h0_ref, enc_ref,
                         wih_t_ref, whh_t_ref, bih_ref, bhh_ref,
                         wc1_t_ref, wc2_t_ref, bc_ref,
                         wo_t_ref, bo_ref,
                         logits_ref, hnew_ref,
                         concat_sc, *, seq_len):
    Hp = h0_ref.shape[-1]

    # Recurrent + attention part runs once; the V grid axis is 'arbitrary' (sequential).
    @pl.when(pl.program_id(0) == 0)
    def _():
        emb = emb_ref[...]                          # (Bp, Hp)
        h0 = h0_ref[...]                            # (Bp, Hp)
        enc = enc_ref[...]                          # (Bp, Lp, Hp)

        # ---- GRU cell (PyTorch gate order r, z, n); MXU matmuls, f32 accumulate ----
        gi = jnp.dot(emb, wih_t_ref[...], preferred_element_type=jnp.float32) + bih_ref[...]
        gh = jnp.dot(h0, whh_t_ref[...], preferred_element_type=jnp.float32) + bhh_ref[...]
        r = jax.nn.sigmoid(gi[:, 0:Hp] + gh[:, 0:Hp])
        z = jax.nn.sigmoid(gi[:, Hp:2 * Hp] + gh[:, Hp:2 * Hp])
        n = jnp.tanh(gi[:, 2 * Hp:3 * Hp] + r * gh[:, 2 * Hp:3 * Hp])
        h_new = (1.0 - z) * n + z * h0              # (Bp, Hp)

        # ---- dot-score attention as batched MXU contractions (no VPU broadcast temp) ----
        hq = h_new[:, None, :]                      # (Bp, 1, Hp)
        scores = jnp.einsum('bqh,blh->bql', hq, enc,
                            preferred_element_type=jnp.float32)   # (Bp, 1, Lp)
        lane = jax.lax.broadcasted_iota(jnp.int32, scores.shape, 2)
        scores = jnp.where(lane < seq_len, scores, -jnp.inf)      # mask padded L columns
        scores = scores - jnp.max(scores, axis=2, keepdims=True)
        e = jnp.exp(scores)
        attn = e * pl.reciprocal(jnp.sum(e, axis=2, keepdims=True), approx=True)
        context = jnp.einsum('bql,blh->bqh', attn, enc,
                             preferred_element_type=jnp.float32)[:, 0, :]  # (Bp, Hp)

        # ---- concat-linear + tanh (weight split -> no in-kernel concatenate) ----
        concat_sc[...] = jnp.tanh(
            jnp.dot(h_new, wc1_t_ref[...], preferred_element_type=jnp.float32)
            + jnp.dot(context, wc2_t_ref[...], preferred_element_type=jnp.float32)
            + bc_ref[...])
        hnew_ref[...] = h_new

    # ---- output projection for this vocab tile: bf16 weights, f32 accumulation ----
    logits_ref[...] = (
        jnp.dot(concat_sc[...].astype(wo_t_ref.dtype), wo_t_ref[...],
                preferred_element_type=jnp.float32)
        + bo_ref[...])


# --------------------------------------------------------------------------------------
# Kernel 2: masked row softmax over the small padded (Bp, Vp) logits (second pass)
# --------------------------------------------------------------------------------------
def _masked_softmax_kernel(logits_ref, probs_ref, *, valid_cols):
    x = logits_ref[...]
    lane = jax.lax.broadcasted_iota(jnp.int32, x.shape, 1)
    x = jnp.where(lane < valid_cols, x, -jnp.inf)   # drop padded vocab columns
    x = x - jnp.max(x, axis=1, keepdims=True)
    e = jnp.exp(x)
    probs_ref[...] = e * pl.reciprocal(jnp.sum(e, axis=1, keepdims=True), approx=True)


# --------------------------------------------------------------------------------------
# One-time host-side preparation (hoisted out of the autoregressive decode loop)
# --------------------------------------------------------------------------------------
def prepare_params(raw, hidden_size, output_size):
    H, V = hidden_size, output_size
    Hp = _round_up(H, 128)
    Vp = _round_up(V, 128)

    def pad2(x, r, c):
        return jnp.pad(x, ((0, r - x.shape[0]), (0, c - x.shape[1])))

    def pad1(x, n):
        return jnp.pad(x, (0, n - x.shape[0]))

    def pack_gates(w, b):
        # PyTorch packs gates [r; z; n] along dim 0 of (3H, H); pad each gate block
        # separately so in-kernel slices at multiples of Hp stay aligned with the gates.
        w_t = w.T                                                     # (H, 3H)
        wt = jnp.concatenate(
            [pad2(w_t[:, g * H:(g + 1) * H], Hp, Hp) for g in range(3)], axis=1)
        bt = jnp.concatenate(
            [pad1(b[g * H:(g + 1) * H], Hp) for g in range(3)]).reshape(1, 3 * Hp)
        return wt, bt

    wih_t, bih = pack_gates(raw["w_ih"], raw["b_ih"])
    whh_t, bhh = pack_gates(raw["w_hh"], raw["b_hh"])

    wc_t = raw["w_concat"].T                                          # (2H, H)
    wc1_t = pad2(wc_t[:H, :], Hp, Hp)                                 # acts on rnnOutput
    wc2_t = pad2(wc_t[H:, :], Hp, Hp)                                 # acts on context
    bc = pad1(raw["b_concat"], Hp).reshape(1, Hp)

    wo_t = pad2(raw["w_out"].T, Hp, Vp).astype(jnp.bfloat16)          # (Hp, Vp), bf16
    bo = pad1(raw["b_out"], Vp).reshape(1, Vp)

    emb_tbl = jnp.pad(raw["embedding"], ((0, 0), (0, Hp - H)))        # (V, Hp), f32

    return dict(H=H, V=V, Hp=Hp, Vp=Vp, embedding=emb_tbl,
                wih_t=wih_t, whh_t=whh_t, bih=bih, bhh=bhh,
                wc1_t=wc1_t, wc2_t=wc2_t, bc=bc, wo_t=wo_t, bo=bo)


def prepare_encoder_output(encoder_output, prep):
    """(L, B, H) -> padded (Bp, Lp, Hp); call once per source sequence."""
    L, B, H = encoder_output.shape
    Bp = _round_up(B, 8)
    Lp = _round_up(L, 8)
    Hp = prep["Hp"]
    enc = jnp.transpose(encoder_output, (1, 0, 2))
    enc = jnp.pad(enc, ((0, Bp - B), (0, Lp - L), (0, Hp - H)))
    return enc, L


# --------------------------------------------------------------------------------------
# One decode step matching LuongAttnDecoderRNN.forward
# --------------------------------------------------------------------------------------
def luong_attn_decoder_step(input_step, last_hidden, enc_padded, prep, *, seq_len):
    B = input_step.shape[1]
    H, V, Hp, Vp = prep["H"], prep["V"], prep["Hp"], prep["Vp"]
    Bp, Lp = enc_padded.shape[0], enc_padded.shape[1]

    # Glue: embedding gather + pad to (Bp, Hp).
    # TODO(synk): embeddingDropout is eval-mode identity; training dropout not implemented.
    emb = jnp.take(prep["embedding"], input_step[0], axis=0)
    emb = jnp.pad(emb, ((0, Bp - B), (0, 0)))
    h0 = jnp.pad(last_hidden[0], ((0, Bp - B), (0, Hp - H)))

    TV = _pick_v_tile(Vp)
    nv = Vp // TV

    const2 = lambda j: (0, 0)
    const3 = lambda j: (0, 0, 0)
    tiled = lambda j: (0, j)

    # Rough VMEM budget (double-buffered), capped for v7x's 64 MiB VMEM.
    resident = 4 * (3 * Bp * Hp + Bp * Lp * Hp + 6 * Hp * Hp + 2 * Hp * Hp
                    + 7 * Hp + Bp * Hp)
    per_tile = 2 * Hp * TV + 4 * TV + 4 * Bp * TV
    vmem_limit = int(min(64 * 2 ** 20, max(32 * 2 ** 20, 2 * resident + 4 * per_tile)))

    flops = Bp * (16 * Hp * Hp + 4 * Lp * Hp + 2 * Hp * Vp)
    bytes_accessed = (2 * Hp * Vp + 4 * Vp                   # w_out^T (bf16) + b_out
                      + 4 * Bp * Lp * Hp                     # encoder outputs
                      + 4 * 8 * Hp * Hp                      # GRU + concat weights
                      + 4 * (Bp * Vp + 3 * Bp * Hp))         # logits out + emb/h0/h_new
    cost = pl.CostEstimate(flops=int(flops),
                           transcendentals=int(Bp * (4 * Hp + Lp)),
                           bytes_accessed=int(bytes_accessed))

    grid_spec = pltpu.PrefetchScalarGridSpec(
        num_scalar_prefetch=0,
        grid=(nv,),
        in_specs=[
            pl.BlockSpec((Bp, Hp), const2),            # embedded
            pl.BlockSpec((Bp, Hp), const2),            # previous hidden
            pl.BlockSpec((Bp, Lp, Hp), const3),        # encoder outputs (B, L, H)
            pl.BlockSpec((Hp, 3 * Hp), const2),        # w_ih^T (gate-padded)
            pl.BlockSpec((Hp, 3 * Hp), const2),        # w_hh^T (gate-padded)
            pl.BlockSpec((1, 3 * Hp), const2),         # b_ih
            pl.BlockSpec((1, 3 * Hp), const2),         # b_hh
            pl.BlockSpec((Hp, Hp), const2),            # w_concat^T (rnnOutput half)
            pl.BlockSpec((Hp, Hp), const2),            # w_concat^T (context half)
            pl.BlockSpec((1, Hp), const2),             # b_concat
            pl.BlockSpec((Hp, TV), tiled),             # w_out^T vocab tile (bf16)
            pl.BlockSpec((1, TV), tiled),              # b_out vocab tile
        ],
        out_specs=(
            pl.BlockSpec((Bp, TV), tiled),             # logits tile (lane-dense)
            pl.BlockSpec((Bp, Hp), const2),            # new hidden (resident)
        ),
        scratch_shapes=[pltpu.VMEM((Bp, Hp), jnp.float32)],
    )

    logits_p, hnew_p = pl.pallas_call(
        functools.partial(_decoder_core_kernel, seq_len=seq_len),
        out_shape=(jax.ShapeDtypeStruct((Bp, Vp), jnp.float32),
                   jax.ShapeDtypeStruct((Bp, Hp), jnp.float32)),
        grid_spec=grid_spec,
        compiler_params=pltpu.CompilerParams(
            dimension_semantics=("arbitrary",),        # V axis reuses step-0 scratch
            vmem_limit_bytes=vmem_limit),
        cost_estimate=cost,
    )(emb, h0, enc_padded,
      prep["wih_t"], prep["whh_t"], prep["bih"], prep["bhh"],
      prep["wc1_t"], prep["wc2_t"], prep["bc"],
      prep["wo_t"], prep["bo"])

    # Cheap second pass: masked softmax over the small (Bp, Vp) logits.
    vmem = pl.BlockSpec(memory_space=pltpu.MemorySpace.VMEM)
    probs_p = pl.pallas_call(
        functools.partial(_masked_softmax_kernel, valid_cols=V),
        out_shape=jax.ShapeDtypeStruct((Bp, Vp), jnp.float32),
        in_specs=[vmem],
        out_specs=vmem,
    )(logits_p)

    return probs_p[:B, :V], hnew_p[None, :B, :H]


# --------------------------------------------------------------------------------------
# Pure-JAX reference (PyTorch semantics) and demo
# --------------------------------------------------------------------------------------
def _reference_step(input_step, last_hidden, encoder_output, raw):
    H = last_hidden.shape[-1]
    emb = jnp.take(raw["embedding"], input_step[0], axis=0)
    h0 = last_hidden[0]
    gi = emb @ raw["w_ih"].T + raw["b_ih"]
    gh = h0 @ raw["w_hh"].T + raw["b_hh"]
    r = jax.nn.sigmoid(gi[:, :H] + gh[:, :H])
    z = jax.nn.sigmoid(gi[:, H:2 * H] + gh[:, H:2 * H])
    n = jnp.tanh(gi[:, 2 * H:] + r * gh[:, 2 * H:])
    h_new = (1.0 - z) * n + z * h0
    enc = jnp.transpose(encoder_output, (1, 0, 2))
    scores = jnp.einsum('blh,bh->bl', enc, h_new)
    attn = jax.nn.softmax(scores, axis=1)
    context = jnp.einsum('bl,blh->bh', attn, enc)
    concat = jnp.tanh(jnp.concatenate([h_new, context], axis=1) @ raw["w_concat"].T
                      + raw["b_concat"])
    logits = concat @ raw["w_out"].T + raw["b_out"]
    return jax.nn.softmax(logits, axis=1), h_new[None]


def init_params(key, hidden_size, output_size):
    ks = jax.random.split(key, 10)
    H, V = hidden_size, output_size
    s = 1.0 / jnp.sqrt(H)
    return {
        "embedding": jax.random.normal(ks[0], (V, H), jnp.float32),
        "w_ih": jax.random.uniform(ks[1], (3 * H, H), jnp.float32, -s, s),
        "w_hh": jax.random.uniform(ks[2], (3 * H, H), jnp.float32, -s, s),
        "b_ih": jax.random.uniform(ks[3], (3 * H,), jnp.float32, -s, s),
        "b_hh": jax.random.uniform(ks[4], (3 * H,), jnp.float32, -s, s),
        "w_concat": jax.random.uniform(ks[5], (H, 2 * H), jnp.float32, -s, s),
        "b_concat": jax.random.uniform(ks[6], (H,), jnp.float32, -s, s),
        "w_out": jax.random.uniform(ks[7], (V, H), jnp.float32, -s, s),
        "b_out": jax.random.uniform(ks[8], (V,), jnp.float32, -s, s),
    }


if __name__ == "__main__":
    B, H, V, L = 4, 32, 40, 8

    key = jax.random.PRNGKey(0)
    kp, k1, k2, k3 = jax.random.split(key, 4)
    raw = init_params(kp, H, V)

    input_step = jax.random.randint(k1, (1, B), 0, V, dtype=jnp.int32)      # (1, B)
    last_hidden = jax.random.normal(k2, (1, B, H), jnp.float32)             # (1, B, H)
    encoder_output = jax.random.normal(k3, (L, B, H), jnp.float32)          # (L, B, H)

    # One-time prep (hoisted out of the autoregressive decode loop).
    prep = prepare_params(raw, H, V)
    enc_p, seq_len = prepare_encoder_output(encoder_output, prep)

    step = jax.jit(functools.partial(luong_attn_decoder_step, prep=prep, seq_len=seq_len))
    out, hidden = step(input_step, last_hidden, enc_p)
    jax.block_until_ready((out, hidden))

    assert out.shape == (B, V) and hidden.shape == (1, B, H)
    assert bool(jnp.all(jnp.isfinite(out))) and bool(jnp.all(jnp.isfinite(hidden)))
    assert jnp.allclose(jnp.sum(out, axis=1), 1.0, atol=1e-2)

    ref_out, ref_hidden = _reference_step(input_step, last_hidden, encoder_output, raw)
    assert jnp.allclose(out, ref_out, atol=2e-2, rtol=2e-2)
    assert jnp.allclose(hidden, ref_hidden, atol=2e-2, rtol=2e-2)

    print("KERNEL_OK")
</pallas_src>

<mosaic_0001>
module attributes {stable_mosaic.version = 11 : i64} {
  func.func @_masked_softmax_kernel(%arg0: memref<8x128xf32, #tpu.memory_space<vmem>>, %arg1: memref<8x128xf32, #tpu.memory_space<vmem>>) attributes {dimension_semantics = [], scalar_prefetch = 0 : i64, scratch_operands = 0 : i64, tpu.core_type = #tpu.core_type<tc>} {
    %c0 = arith.constant 0 : index
    %c0_0 = arith.constant 0 : index
    %0 = vector.load %arg0[%c0, %c0_0] : memref<8x128xf32, #tpu.memory_space<vmem>>, vector<8x128xf32>
    %1 = tpu.iota {dimensions = array<i32: 1>} : vector<8x128xi32>
    %c40_i32 = arith.constant 40 : i32
    %2 = vector.broadcast %c40_i32 : i32 to vector<8x128xi32>
    %3 = arith.cmpi slt, %1, %2 : vector<8x128xi32>
    %cst = arith.constant 0xFF800000 : f32
    %4 = vector.broadcast %cst : f32 to vector<8x128xf32>
    %5 = arith.select %3, %0, %4 : vector<8x128xi1>, vector<8x128xf32>
    %cst_1 = arith.constant dense<0xFF800000> : vector<8xf32>
    %6 = vector.multi_reduction <maximumf>, %5, %cst_1 [1] : vector<8x128xf32> to vector<8xf32>
    %7 = vector.shape_cast %6 : vector<8xf32> to vector<8x1xf32>
    %8 = vector.broadcast %7 : vector<8x1xf32> to vector<8x128xf32>
    %9 = arith.subf %5, %8 : vector<8x128xf32>
    %10 = math.exp %9 : vector<8x128xf32>
    %cst_2 = arith.constant dense<0.000000e+00> : vector<8xf32>
    %11 = vector.multi_reduction <add>, %10, %cst_2 [1] : vector<8x128xf32> to vector<8xf32>
    %12 = vector.shape_cast %11 : vector<8xf32> to vector<8x1xf32>
    %13 = tpu.reciprocal %12 {approx = true} : vector<8x1xf32> -> vector<8x1xf32>
    %14 = vector.broadcast %13 : vector<8x1xf32> to vector<8x128xf32>
    %15 = arith.mulf %10, %14 : vector<8x128xf32>
    %c0_3 = arith.constant 0 : index
    %c0_4 = arith.constant 0 : index
    %16 = vector.load %arg1[%c0_3, %c0_4] : memref<8x128xf32, #tpu.memory_space<vmem>>, vector<8x128xf32>
    tpu.vector_store %arg1[%c0_3, %c0_4], %15 {strides = array<i32>} : memref<8x128xf32, #tpu.memory_space<vmem>>, vector<8x128xf32>,
    return
  }
}

module attributes {stable_mosaic.version = 11 : i64} {
  func.func @_decoder_core_kernel(%arg0: i32, %arg1: memref<8x128xf32, #tpu.memory_space<vmem>>, %arg2: memref<8x128xf32, #tpu.memory_space<vmem>>, %arg3: memref<8x8x128xf32, #tpu.memory_space<vmem>>, %arg4: memref<128x384xf32, #tpu.memory_space<vmem>>, %arg5: memref<128x384xf32, #tpu.memory_space<vmem>>, %arg6: memref<1x384xf32, #tpu.memory_space<vmem>>, %arg7: memref<1x384xf32, #tpu.memory_space<vmem>>, %arg8: memref<128x128xf32, #tpu.memory_space<vmem>>, %arg9: memref<128x128xf32, #tpu.memory_space<vmem>>, %arg10: memref<1x128xf32, #tpu.memory_space<vmem>>, %arg11: memref<128x128xbf16, #tpu.memory_space<vmem>>, %arg12: memref<1x128xf32, #tpu.memory_space<vmem>>, %arg13: memref<8x128xf32, #tpu.memory_space<vmem>>, %arg14: memref<8x128xf32, #tpu.memory_space<vmem>>, %arg15: memref<8x128xf32, #tpu.memory_space<vmem>>) attributes {dimension_semantics = [#tpu.dimension_semantics<arbitrary>], iteration_bounds = array<i64: 1>, scalar_prefetch = 0 : i64, scratch_operands = 1 : i64, tpu.core_type = #tpu.core_type<tc>, window_params = [{pipeline_mode = #tpu.pipeline_mode<synchronous>, transform_indices = @transform_0, window_bounds = array<i64: 8, 128>}, {pipeline_mode = #tpu.pipeline_mode<synchronous>, transform_indices = @transform_1, window_bounds = array<i64: 8, 128>}, {pipeline_mode = #tpu.pipeline_mode<synchronous>, transform_indices = @transform_2, window_bounds = array<i64: 8, 8, 128>}, {pipeline_mode = #tpu.pipeline_mode<synchronous>, transform_indices = @transform_3, window_bounds = array<i64: 128, 384>}, {pipeline_mode = #tpu.pipeline_mode<synchronous>, transform_indices = @transform_4, window_bounds = array<i64: 128, 384>}, {pipeline_mode = #tpu.pipeline_mode<synchronous>, transform_indices = @transform_5, window_bounds = array<i64: 1, 384>}, {pipeline_mode = #tpu.pipeline_mode<synchronous>, transform_indices = @transform_6, window_bounds = array<i64: 1, 384>}, {pipeline_mode = #tpu.pipeline_mode<synchronous>, transform_indices = @transform_7, window_bounds = array<i64: 128, 128>}, {pipeline_mode = #tpu.pipeline_mode<synchronous>, transform_indices = @transform_8, window_bounds = array<i64: 128, 128>}, {pipeline_mode = #tpu.pipeline_mode<synchronous>, transform_indices = @transform_9, window_bounds = array<i64: 1, 128>}, {transform_indices = @transform_10, window_bounds = array<i64: 128, 128>}, {transform_indices = @transform_11, window_bounds = array<i64: 1, 128>}, {transform_indices = @transform_12, window_bounds = array<i64: 8, 128>}, {pipeline_mode = #tpu.pipeline_mode<synchronous>, transform_indices = @transform_13, window_bounds = array<i64: 8, 128>}]} {
    %c0_i32 = arith.constant 0 : i32
    %0 = arith.cmpi eq, %arg0, %c0_i32 : i32
    %1 = arith.extui %0 : i1 to i32
    %c0_i32_0 = arith.constant 0 : i32
    %2 = arith.cmpi ne, %1, %c0_i32_0 : i32
    scf.if %2 {
      %c0_8 = arith.constant 0 : index
      %c0_9 = arith.constant 0 : index
      %11 = vector.load %arg1[%c0_8, %c0_9] : memref<8x128xf32, #tpu.memory_space<vmem>>, vector<8x128xf32>
      %c0_10 = arith.constant 0 : index
      %c0_11 = arith.constant 0 : index
      %12 = vector.load %arg2[%c0_10, %c0_11] : memref<8x128xf32, #tpu.memory_space<vmem>>, vector<8x128xf32>
      %c0_12 = arith.constant 0 : index
      %c0_13 = arith.constant 0 : index
      %c0_14 = arith.constant 0 : index
      %13 = vector.load %arg3[%c0_12, %c0_13, %c0_14] : memref<8x8x128xf32, #tpu.memory_space<vmem>>, vector<8x8x128xf32>
      %c0_15 = arith.constant 0 : index
      %c0_16 = arith.constant 0 : index
      %14 = vector.load %arg4[%c0_15, %c0_16] : memref<128x384xf32, #tpu.memory_space<vmem>>, vector<128x384xf32>
      %cst_17 = arith.constant dense<0.000000e+00> : vector<8x384xf32>
      %15 = tpu.matmul %11, %14, %cst_17 {dimension_numbers = #tpu.dot_dimension_numbers<[1], [0], [0], [1], [0, 0, 1, 1], [], []>} : vector<8x128xf32>, vector<128x384xf32>, vector<8x384xf32> -> vector<8x384xf32>
      %c0_18 = arith.constant 0 : index
      %c0_19 = arith.constant 0 : index
      %16 = vector.load %arg6[%c0_18, %c0_19] : memref<1x384xf32, #tpu.memory_space<vmem>>, vector<1x384xf32>
      %17 = vector.broadcast %16 : vector<1x384xf32> to vector<8x384xf32>
      %18 = arith.addf %15, %17 : vector<8x384xf32>
      %c0_20 = arith.constant 0 : index
      %c0_21 = arith.constant 0 : index
      %19 = vector.load %arg5[%c0_20, %c0_21] : memref<128x384xf32, #tpu.memory_space<vmem>>, vector<128x384xf32>
      %cst_22 = arith.constant dense<0.000000e+00> : vector<8x384xf32>
      %20 = tpu.matmul %12, %19, %cst_22 {dimension_numbers = #tpu.dot_dimension_numbers<[1], [0], [0], [1], [0, 0, 1, 1], [], []>} : vector<8x128xf32>, vector<128x384xf32>, vector<8x384xf32> -> vector<8x384xf32>
      %c0_23 = arith.constant 0 : index
      %c0_24 = arith.constant 0 : index
      %21 = vector.load %arg7[%c0_23, %c0_24] : memref<1x384xf32, #tpu.memory_space<vmem>>, vector<1x384xf32>
      %22 = vector.broadcast %21 : vector<1x384xf32> to vector<8x384xf32>
      %23 = arith.addf %20, %22 : vector<8x384xf32>
      %24 = vector.extract_strided_slice %18 {offsets = [0, 0], sizes = [8, 128], strides = [1, 1]} : vector<8x384xf32> to vector<8x128xf32>
      %25 = vector.extract_strided_slice %23 {offsets = [0, 0], sizes = [8, 128], strides = [1, 1]} : vector<8x384xf32> to vector<8x128xf32>
      %26 = arith.addf %24, %25 : vector<8x128xf32>
      %27 = arith.negf %26 : vector<8x128xf32>
      %28 = math.exp %27 : vector<8x128xf32>
      %cst_25 = arith.constant 1.000000e+00 : f32
      %29 = vector.broadcast %cst_25 : f32 to vector<8x128xf32>
      %30 = arith.addf %29, %28 : vector<8x128xf32>
      %31 = arith.divf %29, %30 : vector<8x128xf32>
      %32 = vector.extract_strided_slice %18 {offsets = [0, 128], sizes = [8, 128], strides = [1, 1]} : vector<8x384xf32> to vector<8x128xf32>
      %33 = vector.extract_strided_slice %23 {offsets = [0, 128], sizes = [8, 128], strides = [1, 1]} : vector<8x384xf32> to vector<8x128xf32>
      %34 = arith.addf %32, %33 : vector<8x128xf32>
      %35 = arith.negf %34 : vector<8x128xf32>
      %36 = math.exp %35 : vector<8x128xf32>
      %cst_26 = arith.constant 1.000000e+00 : f32
      %37 = vector.broadcast %cst_26 : f32 to vector<8x128xf32>
      %38 = arith.addf %37, %36 : vector<8x128xf32>
      %39 = arith.divf %37, %38 : vector<8x128xf32>
      %40 = vector.extract_strided_slice %18 {offsets = [0, 256], sizes = [8, 128], strides = [1, 1]} : vector<8x384xf32> to vector<8x128xf32>
      %41 = vector.extract_strided_slice %23 {offsets = [0, 256], sizes = [8, 128], strides = [1, 1]} : vector<8x384xf32> to vector<8x128xf32>
      %42 = arith.mulf %31, %41 : vector<8x128xf32>
      %43 = arith.addf %40, %42 : vector<8x128xf32>
      %44 = math.tanh %43 : vector<8x128xf32>
      %cst_27 = arith.constant 1.000000e+00 : f32
      %45 = vector.broadcast %cst_27 : f32 to vector<8x128xf32>
      %46 = arith.subf %45, %39 : vector<8x128xf32>
      %47 = arith.mulf %46, %44 : vector<8x128xf32>
      %48 = arith.mulf %39, %12 : vector<8x128xf32>
      %49 = arith.addf %47, %48 : vector<8x128xf32>
      %50 = vector.shape_cast %49 : vector<8x128xf32> to vector<8x1x128xf32>
      "tpu.trace_start"() <{level = 10 : i32, message = "bqh,blh->bql"}> : () -> ()
      %cst_28 = arith.constant dense<0.000000e+00> : vector<8x1x8xf32>
      %51 = tpu.matmul %50, %13, %cst_28 {dimension_numbers = #tpu.dot_dimension_numbers<[2], [2], [1], [1], [0, 0, 0, 1, 1, 1], [0], [0]>} : vector<8x1x128xf32>, vector<8x8x128xf32>, vector<8x1x8xf32> -> vector<8x1x8xf32>
      "tpu.trace_stop"() : () -> ()
      %52 = tpu.iota {dimensions = array<i32: 2>} : vector<8x1x8xi32>
      %c8_i32 = arith.constant 8 : i32
      %53 = vector.broadcast %c8_i32 : i32 to vector<8x1x8xi32>
      %54 = arith.cmpi slt, %52, %53 : vector<8x1x8xi32>
      %cst_29 = arith.constant 0xFF800000 : f32
      %55 = vector.broadcast %cst_29 : f32 to vector<8x1x8xf32>
      %56 = arith.select %54, %51, %55 : vector<8x1x8xi1>, vector<8x1x8xf32>
      %cst_30 = arith.constant dense<0xFF800000> : vector<8x1xf32>
      %57 = vector.multi_reduction <maximumf>, %56, %cst_30 [2] : vector<8x1x8xf32> to vector<8x1xf32>
      %58 = vector.shape_cast %57 : vector<8x1xf32> to vector<8x1x1xf32>
      %59 = vector.broadcast %58 : vector<8x1x1xf32> to vector<8x1x8xf32>
      %60 = arith.subf %56, %59 : vector<8x1x8xf32>
      %61 = math.exp %60 : vector<8x1x8xf32>
      %cst_31 = arith.constant dense<0.000000e+00> : vector<8x1xf32>
      %62 = vector.multi_reduction <add>, %61, %cst_31 [2] : vector<8x1x8xf32> to vector<8x1xf32>
      %63 = vector.shape_cast %62 : vector<8x1xf32> to vector<8x1x1xf32>
      %64 = tpu.reciprocal %63 {approx = true} : vector<8x1x1xf32> -> vector<8x1x1xf32>
      %65 = vector.broadcast %64 : vector<8x1x1xf32> to vector<8x1x8xf32>
      %66 = arith.mulf %61, %65 : vector<8x1x8xf32>
      "tpu.trace_start"() <{level = 10 : i32, message = "bql,blh->bqh"}> : () -> ()
      %cst_32 = arith.constant dense<0.000000e+00> : vector<8x1x128xf32>
      %67 = tpu.matmul %66, %13, %cst_32 {dimension_numbers = #tpu.dot_dimension_numbers<[2], [1], [1], [2], [0, 0, 0, 1, 1, 2], [0], [0]>} : vector<8x1x8xf32>, vector<8x8x128xf32>, vector<8x1x128xf32> -> vector<8x1x128xf32>
      "tpu.trace_stop"() : () -> ()
      %68 = vector.shape_cast %67 : vector<8x1x128xf32> to vector<8x128xf32>
      %c0_33 = arith.constant 0 : index
      %c0_34 = arith.constant 0 : index
      %69 = vector.load %arg8[%c0_33, %c0_34] : memref<128x128xf32, #tpu.memory_space<vmem>>, vector<128x128xf32>
      %cst_35 = arith.constant dense<0.000000e+00> : vector<8x128xf32>
      %70 = tpu.matmul %49, %69, %cst_35 {dimension_numbers = #tpu.dot_dimension_numbers<[1], [0], [0], [1], [0, 0, 1, 1], [], []>} : vector<8x128xf32>, vector<128x128xf32>, vector<8x128xf32> -> vector<8x128xf32>
      %c0_36 = arith.constant 0 : index
      %c0_37 = arith.constant 0 : index
      %71 = vector.load %arg9[%c0_36, %c0_37] : memref<128x128xf32, #tpu.memory_space<vmem>>, vector<128x128xf32>
      %cst_38 = arith.constant dense<0.000000e+00> : vector<8x128xf32>
      %72 = tpu.matmul %68, %71, %cst_38 {dimension_numbers = #tpu.dot_dimension_numbers<[1], [0], [0], [1], [0, 0, 1, 1], [], []>} : vector<8x128xf32>, vector<128x128xf32>, vector<8x128xf32> -> vector<8x128xf32>
      %73 = arith.addf %70, %72 : vector<8x128xf32>
      %c0_39 = arith.constant 0 : index
      %c0_40 = arith.constant 0 : index
      %74 = vector.load %arg10[%c0_39, %c0_40] : memref<1x128xf32, #tpu.memory_space<vmem>>, vector<1x128xf32>
      %75 = vector.broadcast %74 : vector<1x128xf32> to vector<8x128xf32>
      %76 = arith.addf %73, %75 : vector<8x128xf32>
      %77 = math.tanh %76 : vector<8x128xf32>
      %c0_41 = arith.constant 0 : index
      %c0_42 = arith.constant 0 : index
      %78 = vector.load %arg15[%c0_41, %c0_42] : memref<8x128xf32, #tpu.memory_space<vmem>>, vector<8x128xf32>
      tpu.vector_store %arg15[%c0_41, %c0_42], %77 {strides = array<i32>} : memref<8x128xf32, #tpu.memory_space<vmem>>, vector<8x128xf32>,
      %c0_43 = arith.constant 0 : index
      %c0_44 = arith.constant 0 : index
      %79 = vector.load %arg14[%c0_43, %c0_44] : memref<8x128xf32, #tpu.memory_space<vmem>>, vector<8x128xf32>
      tpu.vector_store %arg14[%c0_43, %c0_44], %49 {strides = array<i32>} : memref<8x128xf32, #tpu.memory_space<vmem>>, vector<8x128xf32>,
    } else {
    }
    %c0 = arith.constant 0 : index
    %c0_1 = arith.constant 0 : index
    %3 = vector.load %arg15[%c0, %c0_1] : memref<8x128xf32, #tpu.memory_space<vmem>>, vector<8x128xf32>
    %4 = arith.truncf %3 : vector<8x128xf32> to vector<8x128xbf16>
    %c0_2 = arith.constant 0 : index
    %c0_3 = arith.constant 0 : index
    %5 = vector.load %arg11[%c0_2, %c0_3] : memref<128x128xbf16, #tpu.memory_space<vmem>>, vector<128x128xbf16>
    %cst = arith.constant dense<0.000000e+00> : vector<8x128xf32>
    %6 = tpu.matmul %4, %5, %cst {dimension_numbers = #tpu.dot_dimension_numbers<[1], [0], [0], [1], [0, 0, 1, 1], [], []>} : vector<8x128xbf16>, vector<128x128xbf16>, vector<8x128xf32> -> vector<8x128xf32>
    %c0_4 = arith.constant 0 : index
    %c0_5 = arith.constant 0 : index
    %7 = vector.load %arg12[%c0_4, %c0_5] : memref<1x128xf32, #tpu.memory_space<vmem>>, vector<1x128xf32>
    %8 = vector.broadcast %7 : vector<1x128xf32> to vector<8x128xf32>
    %9 = arith.addf %6, %8 : vector<8x128xf32>
    %c0_6 = arith.constant 0 : index
    %c0_7 = arith.constant 0 : index
    %10 = vector.load %arg13[%c0_6, %c0_7] : memref<8x128xf32, #tpu.memory_space<vmem>>, vector<8x128xf32>
    tpu.vector_store %arg13[%c0_6, %c0_7], %9 {strides = array<i32>} : memref<8x128xf32, #tpu.memory_space<vmem>>, vector<8x128xf32>,
    return
  }
  func.func @transform_0(%arg0: i32) -> (i32, i32) {
    %c0_i32 = arith.constant 0 : i32
    %c0_i32_0 = arith.constant 0 : i32
    %c0_i32_1 = arith.constant 0 : i32
    return %c0_i32, %c0_i32_0 : i32, i32
  }
  func.func @transform_1(%arg0: i32) -> (i32, i32) {
    %c0_i32 = arith.constant 0 : i32
    %c0_i32_0 = arith.constant 0 : i32
    %c0_i32_1 = arith.constant 0 : i32
    return %c0_i32, %c0_i32_0 : i32, i32
  }
  func.func @transform_2(%arg0: i32) -> (i32, i32, i32) {
    %c0_i32 = arith.constant 0 : i32
    %c0_i32_0 = arith.constant 0 : i32
    %c0_i32_1 = arith.constant 0 : i32
    %c0_i32_2 = arith.constant 0 : i32
    return %c0_i32, %c0_i32_0, %c0_i32_1 : i32, i32, i32
  }
  func.func @transform_3(%arg0: i32) -> (i32, i32) {
    %c0_i32 = arith.constant 0 : i32
    %c0_i32_0 = arith.constant 0 : i32
    %c0_i32_1 = arith.constant 0 : i32
    return %c0_i32, %c0_i32_0 : i32, i32
  }
  func.func @transform_4(%arg0: i32) -> (i32, i32) {
    %c0_i32 = arith.constant 0 : i32
    %c0_i32_0 = arith.constant 0 : i32
    %c0_i32_1 = arith.constant 0 : i32
    return %c0_i32, %c0_i32_0 : i32, i32
  }
  func.func @transform_5(%arg0: i32) -> (i32, i32) {
    %c0_i32 = arith.constant 0 : i32
    %c0_i32_0 = arith.constant 0 : i32
    %c0_i32_1 = arith.constant 0 : i32
    return %c0_i32, %c0_i32_0 : i32, i32
  }
  func.func @transform_6(%arg0: i32) -> (i32, i32) {
    %c0_i32 = arith.constant 0 : i32
    %c0_i32_0 = arith.constant 0 : i32
    %c0_i32_1 = arith.constant 0 : i32
    return %c0_i32, %c0_i32_0 : i32, i32
  }
  func.func @transform_7(%arg0: i32) -> (i32, i32) {
    %c0_i32 = arith.constant 0 : i32
    %c0_i32_0 = arith.constant 0 : i32
    %c0_i32_1 = arith.constant 0 : i32
    return %c0_i32, %c0_i32_0 : i32, i32
  }
  func.func @transform_8(%arg0: i32) -> (i32, i32) {
    %c0_i32 = arith.constant 0 : i32
    %c0_i32_0 = arith.constant 0 : i32
    %c0_i32_1 = arith.constant 0 : i32
    return %c0_i32, %c0_i32_0 : i32, i32
  }
  func.func @transform_9(%arg0: i32) -> (i32, i32) {
    %c0_i32 = arith.constant 0 : i32
    %c0_i32_0 = arith.constant 0 : i32
    %c0_i32_1 = arith.constant 0 : i32
    return %c0_i32, %c0_i32_0 : i32, i32
  }
  func.func @transform_10(%arg0: i32) -> (i32, i32) {
    %c0_i32 = arith.constant 0 : i32
    %c0_i32_0 = arith.constant 0 : i32
    return %c0_i32, %arg0 : i32, i32
  }
  func.func @transform_11(%arg0: i32) -> (i32, i32) {
    %c0_i32 = arith.constant 0 : i32
    %c0_i32_0 = arith.constant 0 : i32
    return %c0_i32, %arg0 : i32, i32
  }
  func.func @transform_12(%arg0: i32) -> (i32, i32) {
    %c0_i32 = arith.constant 0 : i32
    %c0_i32_0 = arith.constant 0 : i32
    return %c0_i32, %arg0 : i32, i32
  }
  func.func @transform_13(%arg0: i32) -> (i32, i32) {
    %c0_i32 = arith.constant 0 : i32
    %c0_i32_0 = arith.constant 0 : i32
    %c0_i32_1 = arith.constant 0 : i32
    return %c0_i32, %c0_i32_0 : i32, i32
  }
}

</mosaic_0001>

<llo_original>
// kernel: luong_attn_decoder_step.3
$region0: #{luong_attn_decoder_step.3}
  #allocation0 [shape = 'u32[]', space=smem, size = 0x4, offset = 0x4, fixed_abs, tag = 'smem constant byte address 0x4 - core index']
  #allocation1 [shape = 'u32[144,128]{1,0:T(1,128)}', space=vmem, size = 0x12000, scoped, tag = 'internal scratch']
  %s0 = inlined_call_operand.vmem [shape: f32[8,128], index: 0, kind: input, shape index: {}]
  %s1 = inlined_call_operand.vmem [shape: f32[8,128], index: 1, kind: output, shape index: {}]
  %s2 = sld [smem:[#allocation0]]
  $region14: #{luong_attn_decoder_step.3} parent=0
    _
  %s4 = ssub.s32 1, %s2
  %s5 = scalar_select 0, %s4, %s2
  // Predicated region
  $region2: #{luong_attn_decoder_step.3} parent=0 // pred_check
    _
  $region3: #{luong_attn_decoder_step.3} parent=0 // pred_check_branch
    %7 = sbr.rel (0) target = $region5
  $region4: #{luong_attn_decoder_step.3} parent=0 // pred_region
    _
  $region5: #{luong_attn_decoder_step.3} parent=0 // pred_fallthru
    _
  %v8 = vld [vmem:[%s0] sm:$0xff]
  %v9 = vlaneseq
  %v10 = vand.u32 %v9, 127
  %vm11 = vcmp.lt.s32.totalorder %v10, 40
  %v12 = vsel %vm11, %v8, -inf
  %13 = vmax.xlane.f32.xlu0 %v12
  %v14 = vpop.xlane.xlu0 %13
  %v15 = vsub.f32 %v12, %v14
  %v16 = vmul.f32 %v15, 1.442695
  %v17 = vpow.pop %v16
  %18 = vadd.xlane.f32.xlu0 %v17
  %v19 = vpop.xlane.xlu0 %18
  %v20 = vrcp.pop %v19
  %v21 = vmul.f32 %v17, %v20
  %22 = vst [vmem:[%s1] sm:$0xff] %v21
  // Predicated region
  $region6: #{luong_attn_decoder_step.3} parent=0 // pred_check
    _
  $region7: #{luong_attn_decoder_step.3} parent=0 // pred_check_branch
    %24 = sbr.rel (0) target = $region9
  $region8: #{luong_attn_decoder_step.3} parent=0 // pred_region
    _
  $region9: #{luong_attn_decoder_step.3} parent=0 // pred_fallthru
    _
  // Predicated region
  $region10: #{luong_attn_decoder_step.3} parent=0 // pred_check
    _
  $region11: #{luong_attn_decoder_step.3} parent=0 // pred_check_branch
    %26 = sbr.rel (0) target = $region13
  $region12: #{luong_attn_decoder_step.3} parent=0 // pred_region
    _
  $region13: #{luong_attn_decoder_step.3} parent=0 // pred_fallthru
    _

// kernel: luong_attn_decoder_step.2
$region0: #{luong_attn_decoder_step.2}
  #allocation0 [shape = 'u32[]', space=smem, size = 0x4, offset = 0x4, fixed_abs, tag = 'smem constant byte address 0x4 - core index']
  #allocation1 [shape = 'u32[144,128]{1,0:T(1,128)}', space=vmem, size = 0x12000, scoped, tag = 'internal scratch']
  #allocation2 [shape = 'f32[8,128]{1,0:T(8,128)}', space=vmem, size = 0x1000, scoped, tag = 'scratch operand']
  %s0 = inlined_call_operand.vmem [shape: f32[8,128], index: 0, kind: input, shape index: {}]
  %s1 = inlined_call_operand.vmem [shape: f32[8,128], index: 1, kind: input, shape index: {}]
  %s2 = inlined_call_operand.vmem [shape: f32[8,8,128], index: 2, kind: input, shape index: {}]
  %s3 = inlined_call_operand.hbm [shape: f32[128,384], index: 3, kind: input, shape index: {}]
  %s4 = inlined_call_operand.hbm [shape: f32[128,384], index: 4, kind: input, shape index: {}]
  %s5 = inlined_call_operand.vmem [shape: f32[1,384], index: 5, kind: input, shape index: {}]
  %s6 = inlined_call_operand.vmem [shape: f32[1,384], index: 6, kind: input, shape index: {}]
  %s7 = inlined_call_operand.hbm [shape: f32[128,128], index: 7, kind: input, shape index: {}]
  %s8 = inlined_call_operand.hbm [shape: f32[128,128], index: 8, kind: input, shape index: {}]
  %s9 = inlined_call_operand.vmem [shape: f32[1,128], index: 9, kind: input, shape index: {}]
  %s10 = inlined_call_operand.hbm [shape: bf16[128,128], index: 10, kind: input, shape index: {}]
  %s11 = inlined_call_operand.vmem [shape: f32[1,128], index: 11, kind: input, shape index: {}]
  %s12 = inlined_call_operand.vmem [shape: f32[8,128], index: 12, kind: output, shape index: {0}]
  %s13 = inlined_call_operand.vmem [shape: f32[8,128], index: 13, kind: output, shape index: {1}]
  %14 = xla_tuple %s12, %s13
  %s15 = sld [smem:[#allocation0]]
  $region90: #{luong_attn_decoder_step.2} parent=0
    _
  %s17 = ssub.s32 1, %s15
  %s18 = scalar_select 0, %s17, %s15
  $region1: #{luong_attn_decoder_step.2} parent=0
    #allocation3 [shape = 'u8[196608]{0}', space=vmem, size = 0x30000, scoped, tag = 'input window, operand 3, single buffered']
    #allocation4 [shape = 's32[1]{0}', space=sflag, size = 0x4, scoped, tag = 'scoped memory for luong_attn_decoder_step.2']
    #allocation5 [shape = 'u8[196608]{0}', space=vmem, size = 0x30000, scoped, tag = 'input window, operand 4, single buffered']
    #allocation6 [shape = 's32[1]{0}', space=sflag, size = 0x4, scoped, tag = 'scoped memory for luong_attn_decoder_step.2']
    #allocation7 [shape = 'u8[65536]{0}', space=vmem, size = 0x10000, scoped, tag = 'input window, operand 7, single buffered']
    #allocation8 [shape = 'u8[65536]{0}', space=vmem, size = 0x10000, scoped, tag = 'input window, operand 8, single buffered']
    #allocation9 [shape = 's32[1]{0}', space=sflag, size = 0x4, scoped, tag = 'scoped memory for luong_attn_decoder_step.2']
    #allocation10 [shape = 'u8[32768]{0}', space=vmem, size = 0x8000, scoped, tag = 'input window, operand 10, single buffered']
    %19 = vsyncpa [#allocation4], 0
    %20 = vsyncpa [#allocation6], 0
    %21 = vsyncpa [#allocation9], 0
    // Predicated region
    $region2: #{luong_attn_decoder_step.2} parent=1 // pred_check
      _
    $region3: #{luong_attn_decoder_step.2} parent=1 // pred_check_branch
      %23 = sbr.rel (0) target = $region5
    $region4: #{luong_attn_decoder_step.2} parent=1 // pred_region
      _
    $region5: #{luong_attn_decoder_step.2} parent=1 // pred_fallthru
      _
    // Predicated region
    $region6: #{luong_attn_decoder_step.2} parent=1 // pred_check
      _
    $region7: #{luong_attn_decoder_step.2} parent=1 // pred_check_branch
      %25 = sbr.rel (0) target = $region9
    $region8: #{luong_attn_decoder_step.2} parent=1 // pred_region
      _
    $region9: #{luong_attn_decoder_step.2} parent=1 // pred_fallthru
      _
    // Predicated region
    $region10: #{luong_attn_decoder_step.2} parent=1 // pred_check
      _
    $region11: #{luong_attn_decoder_step.2} parent=1 // pred_check_branch
      %27 = sbr.rel (0) target = $region13
    $region12: #{luong_attn_decoder_step.2} parent=1 // pred_region
      _
    $region13: #{luong_attn_decoder_step.2} parent=1 // pred_fallthru
      _
    // Predicated region
    $region14: #{luong_attn_decoder_step.2} parent=1 // pred_check
      _
    $region15: #{luong_attn_decoder_step.2} parent=1 // pred_check_branch
      %29 = sbr.rel (0) target = $region17
    $region16: #{luong_attn_decoder_step.2} parent=1 // pred_region
      %s31 = ssub.s32 6144, 6144
      %32 = vsyncadd [#allocation4], %s31
      %s33 = sshll.u32 [#allocation3], 4
      %s34 = int_to_ptr.vmem [resolvable:$true] %s33
      %39 = dma.hbm_to_vmem [thread:$0]  %s3, 6144, %s34, [#allocation4], 384, 384, 24
    $region17: #{luong_attn_decoder_step.2} parent=1 // pred_fallthru
      _
    // Predicated region
    $region18: #{luong_attn_decoder_step.2} parent=1 // pred_check
      _
    $region19: #{luong_attn_decoder_step.2} parent=1 // pred_check_branch
      %41 = sbr.rel (0) target = $region21
    $region20: #{luong_attn_decoder_step.2} parent=1 // pred_region
      %s43 = ssub.s32 6144, 6144
      %44 = vsyncadd [#allocation6], %s43
      %s45 = sshll.u32 [#allocation5], 4
      %s46 = int_to_ptr.vmem [resolvable:$true] %s45
      %51 = dma.hbm_to_vmem [thread:$0]  %s4, 6144, %s46, [#allocation6], 384, 384, 24
    $region21: #{luong_attn_decoder_step.2} parent=1 // pred_fallthru
      _
    // Predicated region
    $region22: #{luong_attn_decoder_step.2} parent=1 // pred_check
      _
    $region23: #{luong_attn_decoder_step.2} parent=1 // pred_check_branch
      %53 = sbr.rel (0) target = $region25
    $region24: #{luong_attn_decoder_step.2} parent=1 // pred_region
      _
    $region25: #{luong_attn_decoder_step.2} parent=1 // pred_fallthru
      _
    // Predicated region
    $region26: #{luong_attn_decoder_step.2} parent=1 // pred_check
      _
    $region27: #{luong_attn_decoder_step.2} parent=1 // pred_check_branch
      %55 = sbr.rel (0) target = $region29
    $region28: #{luong_attn_decoder_step.2} parent=1 // pred_region
      _
    $region29: #{luong_attn_decoder_step.2} parent=1 // pred_fallthru
      _
    // Predicated region
    $region30: #{luong_attn_decoder_step.2} parent=1 // pred_check
      _
    $region31: #{luong_attn_decoder_step.2} parent=1 // pred_check_branch
      %57 = sbr.rel (0) target = $region33
    $region32: #{luong_attn_decoder_step.2} parent=1 // pred_region
      %s59 = ssub.s32 2048, 2048
      %60 = vsyncadd [#allocation6], %s59
      %s61 = sshll.u32 [#allocation7], 4
      %s62 = int_to_ptr.vmem [resolvable:$true] %s61
      %67 = dma.hbm_to_vmem [thread:$0]  %s7, 2048, %s62, [#allocation6], 128, 128, 8
    $region33: #{luong_attn_decoder_step.2} parent=1 // pred_fallthru
      _
    // Predicated region
    $region34: #{luong_attn_decoder_step.2} parent=1 // pred_check
      _
    $region35: #{luong_attn_decoder_step.2} parent=1 // pred_check_branch
      %69 = sbr.rel (0) target = $region37
    $region36: #{luong_attn_decoder_step.2} parent=1 // pred_region
      %s71 = ssub.s32 2048, 2048
      %72 = vsyncadd [#allocation9], %s71
      %s73 = sshll.u32 [#allocation8], 4
      %s74 = int_to_ptr.vmem [resolvable:$true] %s73
      %79 = dma.hbm_to_vmem [thread:$0]  %s8, 2048, %s74, [#allocation9], 128, 128, 8
    $region37: #{luong_attn_decoder_step.2} parent=1 // pred_fallthru
      _
    // Predicated region
    $region38: #{luong_attn_decoder_step.2} parent=1 // pred_check
      _
    $region39: #{luong_attn_decoder_step.2} parent=1 // pred_check_branch
      %81 = sbr.rel (0) target = $region41
    $region40: #{luong_attn_decoder_step.2} parent=1 // pred_region
      _
    $region41: #{luong_attn_decoder_step.2} parent=1 // pred_fallthru
      _
    // Predicated region
    $region42: #{luong_attn_decoder_step.2} parent=1 // pred_check
      _
    $region43: #{luong_attn_decoder_step.2} parent=1 // pred_check_branch
      %83 = sbr.rel (0) target = $region45
    $region44: #{luong_attn_decoder_step.2} parent=1 // pred_region
      %s85 = ssub.s32 1024, 1024
      %86 = vsyncadd [#allocation9], %s85
      %s87 = sshll.u32 [#allocation10], 4
      %s88 = int_to_ptr.vmem [resolvable:$true] %s87
      %93 = dma.hbm_to_vmem [thread:$0]  %s10, 1024, %s88, [#allocation9], 64, 64, 4
    $region45: #{luong_attn_decoder_step.2} parent=1 // pred_fallthru
      _
    // Predicated region
    $region46: #{luong_attn_decoder_step.2} parent=1 // pred_check
      _
    $region47: #{luong_attn_decoder_step.2} parent=1 // pred_check_branch
      %95 = sbr.rel (0) target = $region49
    $region48: #{luong_attn_decoder_step.2} parent=1 // pred_region
      _
    $region49: #{luong_attn_decoder_step.2} parent=1 // pred_fallthru
      _
    // Predicated region
    $region50: #{luong_attn_decoder_step.2} parent=1 // pred_check
      _
    $region51: #{luong_attn_decoder_step.2} parent=1 // pred_check_branch
      %97 = sbr.rel (0) target = $region53
    $region52: #{luong_attn_decoder_step.2} parent=1 // pred_region
      %98 = dma.done [#allocation4], 6144
    $region53: #{luong_attn_decoder_step.2} parent=1 // pred_fallthru
      _
    // Predicated region
    $region54: #{luong_attn_decoder_step.2} parent=1 // pred_check
      _
    $region55: #{luong_attn_decoder_step.2} parent=1 // pred_check_branch
      %100 = sbr.rel (0) target = $region57
    $region56: #{luong_attn_decoder_step.2} parent=1 // pred_region
      %101 = dma.done [#allocation6], 6144
    $region57: #{luong_attn_decoder_step.2} parent=1 // pred_fallthru
      _
    // Predicated region
    $region58: #{luong_attn_decoder_step.2} parent=1 // pred_check
      _
    $region59: #{luong_attn_decoder_step.2} parent=1 // pred_check_branch
      %103 = sbr.rel (0) target = $region61
    $region60: #{luong_attn_decoder_step.2} parent=1 // pred_region
      %104 = dma.done [#allocation6], 2048
    $region61: #{luong_attn_decoder_step.2} parent=1 // pred_fallthru
      _
    // Predicated region
    $region62: #{luong_attn_decoder_step.2} parent=1 // pred_check
      _
    $region63: #{luong_attn_decoder_step.2} parent=1 // pred_check_branch
      %106 = sbr.rel (0) target = $region65
    $region64: #{luong_attn_decoder_step.2} parent=1 // pred_region
      %107 = dma.done [#allocation9], 2048
    $region65: #{luong_attn_decoder_step.2} parent=1 // pred_fallthru
      _
    // Predicated region
    $region66: #{luong_attn_decoder_step.2} parent=1 // pred_check
      _
    $region67: #{luong_attn_decoder_step.2} parent=1 // pred_check_branch
      %109 = sbr.rel (0) target = $region69
    $region68: #{luong_attn_decoder_step.2} parent=1 // pred_region
      %110 = dma.done [#allocation9], 1024
    $region69: #{luong_attn_decoder_step.2} parent=1 // pred_fallthru
      _
    %p112 = scmp.eq.s32.totalorder 0, 0
    // Predicated region
    $region70: #{luong_attn_decoder_step.2} parent=1 // pred_check
      %p113 = pneg %p112
    $region71: #{luong_attn_decoder_step.2} parent=1 // pred_check_branch
      %115 = sbr.rel (%p113) target = $region73
    $region72: #{luong_attn_decoder_step.2} parent=1 // pred_region
      %v116 = vld [vmem:[%s0] sm:$0xff]
      %v117 = vld [vmem:[%s1] sm:$0xff]
      %v118 = vld [vmem:[%s2] sm:$0xff]
      %v119 = vld [vmem:[%s2 + $0x8] sm:$0xff]
      %v120 = vld [vmem:[%s2 + $0x10] sm:$0xff]
      %v121 = vld [vmem:[%s2 + $0x18] sm:$0xff]
      %v122 = vld [vmem:[%s2 + $0x20] sm:$0xff]
      %v123 = vld [vmem:[%s2 + $0x28] sm:$0xff]
      %v124 = vld [vmem:[%s2 + $0x30] sm:$0xff]
      %v125 = vld [vmem:[%s2 + $0x38] sm:$0xff]
      %v126 = vld [vmem:[#allocation3] sm:$0xff]
      %v127 = vld [vmem:[#allocation3 + $0x8] sm:$0xff]
      %v128 = vld [vmem:[#allocation3 + $0x10] sm:$0xff]
      %v129 = vld [vmem:[#allocation3 + $0x18] sm:$0xff]
      %v130 = vld [vmem:[#allocation3 + $0x20] sm:$0xff]
      %v131 = vld [vmem:[#allocation3 + $0x28] sm:$0xff]
      %v132 = vld [vmem:[#allocation3 + $0x30] sm:$0xff]
      %v133 = vld [vmem:[#allocation3 + $0x38] sm:$0xff]
      %v134 = vld [vmem:[#allocation3 + $0x40] sm:$0xff]
      %v135 = vld [vmem:[#allocation3 + $0x48] sm:$0xff]
      %v136 = vld [vmem:[#allocation3 + $0x50] sm:$0xff]
      %v137 = vld [vmem:[#allocation3 + $0x58] sm:$0xff]
      %v138 = vld [vmem:[#allocation3 + $0x60] sm:$0xff]
      %v139 = vld [vmem:[#allocation3 + $0x68] sm:$0xff]
      %v140 = vld [vmem:[#allocation3 + $0x70] sm:$0xff]
      %v141 = vld [vmem:[#allocation3 + $0x78] sm:$0xff]
      %v142 = vld [vmem:[#allocation3 + $0x80] sm:$0xff]
      %v143 = vld [vmem:[#allocation3 + $0x88] sm:$0xff]
      %v144 = vld [vmem:[#allocation3 + $0x90] sm:$0xff]
      %v145 = vld [vmem:[#allocation3 + $0x98] sm:$0xff]
      %v146 = vld [vmem:[#allocation3 + $0xa0] sm:$0xff]
      %v147 = vld [vmem:[#allocation3 + $0xa8] sm:$0xff]
      %v148 = vld [vmem:[#allocation3 + $0xb0] sm:$0xff]
      %v149 = vld [vmem:[#allocation3 + $0xb8] sm:$0xff]
      %v150 = vld [vmem:[#allocation3 + $0xc0] sm:$0xff]
      %v151 = vld [vmem:[#allocation3 + $0xc8] sm:$0xff]
      %v152 = vld [vmem:[#allocation3 + $0xd0] sm:$0xff]
      %v153 = vld [vmem:[#allocation3 + $0xd8] sm:$0xff]
      %v154 = vld [vmem:[#allocation3 + $0xe0] sm:$0xff]
      %v155 = vld [vmem:[#allocation3 + $0xe8] sm:$0xff]
      %v156 = vld [vmem:[#allocation3 + $0xf0] sm:$0xff]
      %v157 = vld [vmem:[#allocation3 + $0xf8] sm:$0xff]
      %v158 = vld [vmem:[#allocation3 + $0x100] sm:$0xff]
      %v159 = vld [vmem:[#allocation3 + $0x108] sm:$0xff]
      %v160 = vld [vmem:[#allocation3 + $0x110] sm:$0xff]
      %v161 = vld [vmem:[#allocation3 + $0x118] sm:$0xff]
      %v162 = vld [vmem:[#allocation3 + $0x120] sm:$0xff]
      %v163 = vld [vmem:[#allocation3 + $0x128] sm:$0xff]
      %v164 = vld [vmem:[#allocation3 + $0x130] sm:$0xff]
      %v165 = vld [vmem:[#allocation3 + $0x138] sm:$0xff]
      %v166 = vld [vmem:[#allocation3 + $0x140] sm:$0xff]
      %v167 = vld [vmem:[#allocation3 + $0x148] sm:$0xff]
      %v168 = vld [vmem:[#allocation3 + $0x150] sm:$0xff]
      %v169 = vld [vmem:[#allocation3 + $0x158] sm:$0xff]
      %v170 = vld [vmem:[#allocation3 + $0x160] sm:$0xff]
      %v171 = vld [vmem:[#allocation3 + $0x168] sm:$0xff]
      %v172 = vld [vmem:[#allocation3 + $0x170] sm:$0xff]
      %v173 = vld [vmem:[#allocation3 + $0x178] sm:$0xff]
      %v174 = vld [vmem:[%s5] sm:$0x7]
      %v176 = vlaneseq
      %v177 = vshrl.u32 %v176, 7
      %v178 = vsub.s32 0, %v177
      %v179 = vrot.slane %v174, %v178
      %v180 = vlaneseq
      %v181 = vshrl.u32 %v180, 7
      %v182 = vsub.s32 1, %v181
      %v183 = vrot.slane %v174, %v182
      %v184 = vlaneseq
      %v185 = vshrl.u32 %v184, 7
      %v186 = vsub.s32 2, %v185
      %v187 = vrot.slane %v174, %v186
      %191 = vmatprep.subr.mxu0 %v172
      %192 = vmatpush1.msra.mxu0 %v171
      %193 = vmatprep.subr.mxu0 %v169
      %194 = vmatpush1.msra.mxu0 %v168
      %195 = vmatprep.subr.mxu0 %v166
      %196 = vmatpush1.msra.mxu0 %v165
      %197 = vmatprep.subr.mxu0 %v163
      %198 = vmatpush1.msra.mxu0 %v162
      %199 = vmatprep.subr.mxu0 %v160
      %200 = vmatpush1.msra.mxu0 %v159
      %201 = vmatprep.subr.mxu0 %v157
      %202 = vmatpush1.msra.mxu0 %v156
      %203 = vmatprep.subr.mxu0 %v154
      %204 = vmatpush1.msra.mxu0 %v153
      %205 = vmatprep.subr.mxu0 %v151
      %206 = vmatpush1.msra.mxu0 %v150
      %207 = vmatprep.subr.mxu0 %v148
      %208 = vmatpush1.msra.mxu0 %v147
      %209 = vmatprep.subr.mxu0 %v145
      %210 = vmatpush1.msra.mxu0 %v144
      %211 = vmatprep.subr.mxu0 %v142
      %212 = vmatpush1.msra.mxu0 %v141
      %213 = vmatprep.subr.mxu0 %v139
      %214 = vmatpush1.msra.mxu0 %v138
      %215 = vmatprep.subr.mxu0 %v136
      %216 = vmatpush1.msra.mxu0 %v135
      %217 = vmatprep.subr.mxu0 %v133
      %218 = vmatpush1.msra.mxu0 %v132
      %219 = vmatprep.subr.mxu0 %v130
      %220 = vmatpush1.msra.mxu0 %v129
      %221 = vmatprep.subr.mxu0 %v127
      %222 = vmatpush1.msra.mxu0 %v126
      %223 = vmatprep.subr.mxu0 0.0
      %224 = vmatpush2.msra.mxu0 0.0
      %225 = vmatprep.subr.mxu0 0.0
      %226 = vmatpush2.msra.mxu0 0.0
      %227 = vmatprep.subr.mxu0 0.0
      %228 = vmatpush2.msra.mxu0 0.0
      %229 = vmatprep.subr.mxu0 0.0
      %230 = vmatpush2.msra.mxu0 0.0
      %231 = vmatprep.subr.mxu0 0.0
      %232 = vmatpush2.msra.mxu0 0.0
      %233 = vmatprep.subr.mxu0 0.0
      %234 = vmatpush2.msra.mxu0 0.0
      %235 = vmatprep.subr.mxu0 0.0
      %236 = vmatpush2.msra.mxu0 0.0
      %237 = vmatprep.subr.mxu0 0.0
      %238 = vmatpush2.msra.mxu0 0.0
      %239 = vmatprep.subr.mxu0 0.0
      %240 = vmatpush2.msra.mxu0 0.0
      %241 = vmatprep.subr.mxu0 0.0
      %242 = vmatpush2.msra.mxu0 0.0
      %243 = vmatprep.subr.mxu0 0.0
      %244 = vmatpush2.msra.mxu0 0.0
      %245 = vmatprep.subr.mxu0 0.0
      %246 = vmatpush2.msra.mxu0 0.0
      %247 = vmatprep.subr.mxu0 0.0
      %248 = vmatpush2.msra.mxu0 0.0
      %249 = vmatprep.subr.mxu0 0.0
      %250 = vmatpush2.msra.mxu0 0.0
      %251 = vmatprep.subr.mxu0 0.0
      %252 = vmatpush2.msra.mxu0 0.0
      %253 = vmatprep.subr.mxu0 0.0
      %254 = vmatpush2.msra.mxu0 0.0
      %255 = vmatprep.mubr.f32.mxu0 0.0
      %256 = vmatmul.mubr.f32.gmra.mxu0 %v116
      %v257 = vpop.f32.mrf.mxu0
      %v258 = vadd.f32 %v179, %v257
      %v259 = vpop.f32.mrf.mxu0
      %v260 = vadd.f32 %v183, %v259
      %261 = vdwg.mxu0
      %262 = vmatprep.subr.mxu0 0.0
      %263 = vmatpush1.msra.mxu0 %v173
      %264 = vmatprep.subr.mxu0 0.0
      %265 = vmatpush1.msra.mxu0 %v170
      %266 = vmatprep.subr.mxu0 0.0
      %267 = vmatpush1.msra.mxu0 %v167
      %268 = vmatprep.subr.mxu0 0.0
      %269 = vmatpush1.msra.mxu0 %v164
      %270 = vmatprep.subr.mxu0 0.0
      %271 = vmatpush1.msra.mxu0 %v161
      %272 = vmatprep.subr.mxu0 0.0
      %273 = vmatpush1.msra.mxu0 %v158
      %274 = vmatprep.subr.mxu0 0.0
      %275 = vmatpush1.msra.mxu0 %v155
      %276 = vmatprep.subr.mxu0 0.0
      %277 = vmatpush1.msra.mxu0 %v152
      %278 = vmatprep.subr.mxu0 0.0
      %279 = vmatpush1.msra.mxu0 %v149
      %280 = vmatprep.subr.mxu0 0.0
      %281 = vmatpush1.msra.mxu0 %v146
      %282 = vmatprep.subr.mxu0 0.0
      %283 = vmatpush1.msra.mxu0 %v143
      %284 = vmatprep.subr.mxu0 0.0
      %285 = vmatpush1.msra.mxu0 %v140
      %286 = vmatprep.subr.mxu0 0.0
      %287 = vmatpush1.msra.mxu0 %v137
      %288 = vmatprep.subr.mxu0 0.0
      %289 = vmatpush1.msra.mxu0 %v134
      %290 = vmatprep.subr.mxu0 0.0
      %291 = vmatpush1.msra.mxu0 %v131
      %292 = vmatprep.subr.mxu0 0.0
      %293 = vmatpush1.msra.mxu0 %v128
      %294 = vmatprep.subr.mxu0 0.0
      %295 = vmatpush2.msra.mxu0 0.0
      %296 = vmatprep.subr.mxu0 0.0
      %297 = vmatpush2.msra.mxu0 0.0
      %298 = vmatprep.subr.mxu0 0.0
      %299 = vmatpush2.msra.mxu0 0.0
      %300 = vmatprep.subr.mxu0 0.0
      %301 = vmatpush2.msra.mxu0 0.0
      %302 = vmatprep.subr.mxu0 0.0
      %303 = vmatpush2.msra.mxu0 0.0
      %304 = vmatprep.subr.mxu0 0.0
      %305 = vmatpush2.msra.mxu0 0.0
      %306 = vmatprep.subr.mxu0 0.0
      %307 = vmatpush2.msra.mxu0 0.0
      %308 = vmatprep.subr.mxu0 0.0
      %309 = vmatpush2.msra.mxu0 0.0
      %310 = vmatprep.subr.mxu0 0.0
      %311 = vmatpush2.msra.mxu0 0.0
      %312 = vmatprep.subr.mxu0 0.0
      %313 = vmatpush2.msra.mxu0 0.0
      %314 = vmatprep.subr.mxu0 0.0
      %315 = vmatpush2.msra.mxu0 0.0
      %316 = vmatprep.subr.mxu0 0.0
      %317 = vmatpush2.msra.mxu0 0.0
      %318 = vmatprep.subr.mxu0 0.0
      %319 = vmatpush2.msra.mxu0 0.0
      %320 = vmatprep.subr.mxu0 0.0
      %321 = vmatpush2.msra.mxu0 0.0
      %322 = vmatprep.subr.mxu0 0.0
      %323 = vmatpush2.msra.mxu0 0.0
      %324 = vmatprep.subr.mxu0 0.0
      %325 = vmatpush2.msra.mxu0 0.0
      %326 = vmatprep.mubr.f32.mxu0 0.0
      %327 = vmatmul.mubr.f32.gmra.mxu0 %v116
      %v328 = vpop.f32.mrf.mxu0
      %v329 = vadd.f32 %v187, %v328
      %v330 = vpop.f32.mrf.mxu0
      %331 = vdwg.mxu0
      %v332 = vld [vmem:[#allocation5] sm:$0xff]
      %v333 = vld [vmem:[#allocation5 + $0x8] sm:$0xff]
      %v334 = vld [vmem:[#allocation5 + $0x10] sm:$0xff]
      %v335 = vld [vmem:[#allocation5 + $0x18] sm:$0xff]
      %v336 = vld [vmem:[#allocation5 + $0x20] sm:$0xff]
      %v337 = vld [vmem:[#allocation5 + $0x28] sm:$0xff]
      %v338 = vld [vmem:[#allocation5 + $0x30] sm:$0xff]
      %v339 = vld [vmem:[#allocation5 + $0x38] sm:$0xff]
      %v340 = vld [vmem:[#allocation5 + $0x40] sm:$0xff]
      %v341 = vld [vmem:[#allocation5 + $0x48] sm:$0xff]
      %v342 = vld [vmem:[#allocation5 + $0x50] sm:$0xff]
      %v343 = vld [vmem:[#allocation5 + $0x58] sm:$0xff]
      %v344 = vld [vmem:[#allocation5 + $0x60] sm:$0xff]
      %v345 = vld [vmem:[#allocation5 + $0x68] sm:$0xff]
      %v346 = vld [vmem:[#allocation5 + $0x70] sm:$0xff]
      %v347 = vld [vmem:[#allocation5 + $0x78] sm:$0xff]
      %v348 = vld [vmem:[#allocation5 + $0x80] sm:$0xff]
      %v349 = vld [vmem:[#allocation5 + $0x88] sm:$0xff]
      %v350 = vld [vmem:[#allocation5 + $0x90] sm:$0xff]
      %v351 = vld [vmem:[#allocation5 + $0x98] sm:$0xff]
      %v352 = vld [vmem:[#allocation5 + $0xa0] sm:$0xff]
      %v353 = vld [vmem:[#allocation5 + $0xa8] sm:$0xff]
      %v354 = vld [vmem:[#allocation5 + $0xb0] sm:$0xff]
      %v355 = vld [vmem:[#allocation5 + $0xb8] sm:$0xff]
      %v356 = vld [vmem:[#allocation5 + $0xc0] sm:$0xff]
      %v357 = vld [vmem:[#allocation5 + $0xc8] sm:$0xff]
      %v358 = vld [vmem:[#allocation5 + $0xd0] sm:$0xff]
      %v359 = vld [vmem:[#allocation5 + $0xd8] sm:$0xff]
      %v360 = vld [vmem:[#allocation5 + $0xe0] sm:$0xff]
      %v361 = vld [vmem:[#allocation5 + $0xe8] sm:$0xff]
      %v362 = vld [vmem:[#allocation5 + $0xf0] sm:$0xff]
      %v363 = vld [vmem:[#allocation5 + $0xf8] sm:$0xff]
      %v364 = vld [vmem:[#allocation5 + $0x100] sm:$0xff]
      %v365 = vld [vmem:[#allocation5 + $0x108] sm:$0xff]
      %v366 = vld [vmem:[#allocation5 + $0x110] sm:$0xff]
      %v367 = vld [vmem:[#allocation5 + $0x118] sm:$0xff]
      %v368 = vld [vmem:[#allocation5 + $0x120] sm:$0xff]
      %v369 = vld [vmem:[#allocation5 + $0x128] sm:$0xff]
      %v370 = vld [vmem:[#allocation5 + $0x130] sm:$0xff]
      %v371 = vld [vmem:[#allocation5 + $0x138] sm:$0xff]
      %v372 = vld [vmem:[#allocation5 + $0x140] sm:$0xff]
      %v373 = vld [vmem:[#allocation5 + $0x148] sm:$0xff]
      %v374 = vld [vmem:[#allocation5 + $0x150] sm:$0xff]
      %v375 = vld [vmem:[#allocation5 + $0x158] sm:$0xff]
      %v376 = vld [vmem:[#allocation5 + $0x160] sm:$0xff]
      %v377 = vld [vmem:[#allocation5 + $0x168] sm:$0xff]
      %v378 = vld [vmem:[#allocation5 + $0x170] sm:$0xff]
      %v379 = vld [vmem:[#allocation5 + $0x178] sm:$0xff]
      %v380 = vld [vmem:[%s6] sm:$0x7]
      %v382 = vlaneseq
      %v383 = vshrl.u32 %v382, 7
      %v384 = vsub.s32 0, %v383
      %v385 = vrot.slane %v380, %v384
      %v386 = vlaneseq
      %v387 = vshrl.u32 %v386, 7
      %v388 = vsub.s32 1, %v387
      %v389 = vrot.slane %v380, %v388
      %v390 = vlaneseq
      %v391 = vshrl.u32 %v390, 7
      %v392 = vsub.s32 2, %v391
      %v393 = vrot.slane %v380, %v392
      %397 = vmatprep.subr.mxu0 %v378
      %398 = vmatpush1.msra.mxu0 %v377
      %399 = vmatprep.subr.mxu0 %v375
      %400 = vmatpush1.msra.mxu0 %v374
      %401 = vmatprep.subr.mxu0 %v372
      %402 = vmatpush1.msra.mxu0 %v371
      %403 = vmatprep.subr.mxu0 %v369
      %404 = vmatpush1.msra.mxu0 %v368
      %405 = vmatprep.subr.mxu0 %v366
      %406 = vmatpush1.msra.mxu0 %v365
      %407 = vmatprep.subr.mxu0 %v363
      %408 = vmatpush1.msra.mxu0 %v362
      %409 = vmatprep.subr.mxu0 %v360
      %410 = vmatpush1.msra.mxu0 %v359
      %411 = vmatprep.subr.mxu0 %v357
      %412 = vmatpush1.msra.mxu0 %v356
      %413 = vmatprep.subr.mxu0 %v354
      %414 = vmatpush1.msra.mxu0 %v353
      %415 = vmatprep.subr.mxu0 %v351
      %416 = vmatpush1.msra.mxu0 %v350
      %417 = vmatprep.subr.mxu0 %v348
      %418 = vmatpush1.msra.mxu0 %v347
      %419 = vmatprep.subr.mxu0 %v345
      %420 = vmatpush1.msra.mxu0 %v344
      %421 = vmatprep.subr.mxu0 %v342
      %422 = vmatpush1.msra.mxu0 %v341
      %423 = vmatprep.subr.mxu0 %v339
      %424 = vmatpush1.msra.mxu0 %v338
      %425 = vmatprep.subr.mxu0 %v336
      %426 = vmatpush1.msra.mxu0 %v335
      %427 = vmatprep.subr.mxu0 %v333
      %428 = vmatpush1.msra.mxu0 %v332
      %429 = vmatprep.subr.mxu0 0.0
      %430 = vmatpush2.msra.mxu0 0.0
      %431 = vmatprep.subr.mxu0 0.0
      %432 = vmatpush2.msra.mxu0 0.0
      %433 = vmatprep.subr.mxu0 0.0
      %434 = vmatpush2.msra.mxu0 0.0
      %435 = vmatprep.subr.mxu0 0.0
      %436 = vmatpush2.msra.mxu0 0.0
      %437 = vmatprep.subr.mxu0 0.0
      %438 = vmatpush2.msra.mxu0 0.0
      %439 = vmatprep.subr.mxu0 0.0
      %440 = vmatpush2.msra.mxu0 0.0
      %441 = vmatprep.subr.mxu0 0.0
      %442 = vmatpush2.msra.mxu0 0.0
      %443 = vmatprep.subr.mxu0 0.0
      %444 = vmatpush2.msra.mxu0 0.0
      %445 = vmatprep.subr.mxu0 0.0
      %446 = vmatpush2.msra.mxu0 0.0
      %447 = vmatprep.subr.mxu0 0.0
      %448 = vmatpush2.msra.mxu0 0.0
      %449 = vmatprep.subr.mxu0 0.0
      %450 = vmatpush2.msra.mxu0 0.0
      %451 = vmatprep.subr.mxu0 0.0
      %452 = vmatpush2.msra.mxu0 0.0
      %453 = vmatprep.subr.mxu0 0.0
      %454 = vmatpush2.msra.mxu0 0.0
      %455 = vmatprep.subr.mxu0 0.0
      %456 = vmatpush2.msra.mxu0 0.0
      %457 = vmatprep.subr.mxu0 0.0
      %458 = vmatpush2.msra.mxu0 0.0
      %459 = vmatprep.subr.mxu0 0.0
      %460 = vmatpush2.msra.mxu0 0.0
      %461 = vmatprep.mubr.f32.mxu0 0.0
      %462 = vmatmul.mubr.f32.gmra.mxu0 %v117
      %v463 = vpop.f32.mrf.mxu0
      %v464 = vadd.f32 %v385, %v463
      %v465 = vpop.f32.mrf.mxu0
      %v466 = vadd.f32 %v389, %v465
      %467 = vdwg.mxu0
      %468 = vmatprep.subr.mxu0 0.0
      %469 = vmatpush1.msra.mxu0 %v379
      %470 = vmatprep.subr.mxu0 0.0
      %471 = vmatpush1.msra.mxu0 %v376
      %472 = vmatprep.subr.mxu0 0.0
      %473 = vmatpush1.msra.mxu0 %v373
      %474 = vmatprep.subr.mxu0 0.0
      %475 = vmatpush1.msra.mxu0 %v370
      %476 = vmatprep.subr.mxu0 0.0
      %477 = vmatpush1.msra.mxu0 %v367
      %478 = vmatprep.subr.mxu0 0.0
      %479 = vmatpush1.msra.mxu0 %v364
      %480 = vmatprep.subr.mxu0 0.0
      %481 = vmatpush1.msra.mxu0 %v361
      %482 = vmatprep.subr.mxu0 0.0
      %483 = vmatpush1.msra.mxu0 %v358
      %484 = vmatprep.subr.mxu0 0.0
      %485 = vmatpush1.msra.mxu0 %v355
      %486 = vmatprep.subr.mxu0 0.0
      %487 = vmatpush1.msra.mxu0 %v352
      %488 = vmatprep.subr.mxu0 0.0
      %489 = vmatpush1.msra.mxu0 %v349
      %490 = vmatprep.subr.mxu0 0.0
      %491 = vmatpush1.msra.mxu0 %v346
      %492 = vmatprep.subr.mxu0 0.0
      %493 = vmatpush1.msra.mxu0 %v343
      %494 = vmatprep.subr.mxu0 0.0
      %495 = vmatpush1.msra.mxu0 %v340
      %496 = vmatprep.subr.mxu0 0.0
      %497 = vmatpush1.msra.mxu0 %v337
      %498 = vmatprep.subr.mxu0 0.0
      %499 = vmatpush1.msra.mxu0 %v334
      %500 = vmatprep.subr.mxu0 0.0
      %501 = vmatpush2.msra.mxu0 0.0
      %502 = vmatprep.subr.mxu0 0.0
      %503 = vmatpush2.msra.mxu0 0.0
      %504 = vmatprep.subr.mxu0 0.0
      %505 = vmatpush2.msra.mxu0 0.0
      %506 = vmatprep.subr.mxu0 0.0
      %507 = vmatpush2.msra.mxu0 0.0
      %508 = vmatprep.subr.mxu0 0.0
      %509 = vmatpush2.msra.mxu0 0.0
      %510 = vmatprep.subr.mxu0 0.0
      %511 = vmatpush2.msra.mxu0 0.0
      %512 = vmatprep.subr.mxu0 0.0
      %513 = vmatpush2.msra.mxu0 0.0
      %514 = vmatprep.subr.mxu0 0.0
      %515 = vmatpush2.msra.mxu0 0.0
      %516 = vmatprep.subr.mxu0 0.0
      %517 = vmatpush2.msra.mxu0 0.0
      %518 = vmatprep.subr.mxu0 0.0
      %519 = vmatpush2.msra.mxu0 0.0
      %520 = vmatprep.subr.mxu0 0.0
      %521 = vmatpush2.msra.mxu0 0.0
      %522 = vmatprep.subr.mxu0 0.0
      %523 = vmatpush2.msra.mxu0 0.0
      %524 = vmatprep.subr.mxu0 0.0
      %525 = vmatpush2.msra.mxu0 0.0
      %526 = vmatprep.subr.mxu0 0.0
      %527 = vmatpush2.msra.mxu0 0.0
      %528 = vmatprep.subr.mxu0 0.0
      %529 = vmatpush2.msra.mxu0 0.0
      %530 = vmatprep.subr.mxu0 0.0
      %531 = vmatpush2.msra.mxu0 0.0
      %532 = vmatprep.mubr.f32.mxu0 0.0
      %533 = vmatmul.mubr.f32.gmra.mxu0 %v117
      %v534 = vpop.f32.mrf.mxu0
      %v535 = vadd.f32 %v393, %v534
      %v536 = vpop.f32.mrf.mxu0
      %537 = vdwg.mxu0
      %v538 = vadd.f32 %v258, %v464
      %v539 = vxor.u32 %v538, 2147483648
      %v540 = vmul.f32 %v539, 1.442695
      %v541 = vpow.pop %v540
      %v542 = vadd.f32 %v541, 1.0
      %v543 = vrcp.pop %v542
      %v544 = vmul.f32 1.0, %v543
      %v545 = vadd.f32 %v260, %v466
      %v546 = vxor.u32 %v545, 2147483648
      %v547 = vmul.f32 %v546, 1.442695
      %v548 = vpow.pop %v547
      %v549 = vadd.f32 %v548, 1.0
      %v550 = vrcp.pop %v549
      %v551 = vmul.f32 1.0, %v550
      %v552 = vmul.f32 %v544, %v535
      %v553 = vadd.f32 %v329, %v552
      %v554 = vtanh.pop %v553
      %v555 = vsub.f32 1.0, %v551
      %v556 = vmul.f32 %v555, %v554
      %v557 = vmul.f32 %v551, %v117
      %v558 = vadd.f32 %v556, %v557
      %v560 = vcombine.high %v558, %v558
      %v562 = vunpack.c.l.s4 1966171168
      %v563 = vunpack.c.0.s8 %v562
      %v564 = vlaneseq
      %v565 = vshrl.u32 %v564, 7
      %v566 = vsub.s32 %v563, %v565
      %v567 = vrot.slane %v558, %v566
      %v569 = vunpack.c.l.s4 1966171168
      %v570 = vunpack.c.0.s8 %v569
      %v571 = vlaneseq
      %v572 = vshrl.u32 %v571, 7
      %v573 = vsub.s32 %v570, %v572
      %v574 = vrot.slane %v560, %v573
      %v575 = vcombine.high %v567, %v567
      %v576 = vcombine.high %v574, %v574
      %v578 = vunpack.c.l.s4 1966171168
      %v579 = vunpack.c.0.s8 %v578
      %v580 = vlaneseq
      %v581 = vshrl.u32 %v580, 7
      %v582 = vsub.s32 %v579, %v581
      %v583 = vrot.slane %v567, %v582
      %v585 = vunpack.c.l.s4 1966171168
      %v586 = vunpack.c.0.s8 %v585
      %v587 = vlaneseq
      %v588 = vshrl.u32 %v587, 7
      %v589 = vsub.s32 %v586, %v588
      %v590 = vrot.slane %v574, %v589
      %v592 = vunpack.c.l.s4 1966171168
      %v593 = vunpack.c.0.s8 %v592
      %v594 = vlaneseq
      %v595 = vshrl.u32 %v594, 7
      %v596 = vsub.s32 %v593, %v595
      %v597 = vrot.slane %v575, %v596
      %v599 = vunpack.c.l.s4 1966171168
      %v600 = vunpack.c.0.s8 %v599
      %v601 = vlaneseq
      %v602 = vshrl.u32 %v601, 7
      %v603 = vsub.s32 %v600, %v602
      %v604 = vrot.slane %v576, %v603
      %v605 = vcombine.high %v583, %v583
      %v606 = vcombine.high %v590, %v590
      %v607 = vcombine.high %v597, %v597
      %v608 = vcombine.high %v604, %v604
      %617 = vmatprep.subr.mxu0 0.0
      %618 = vmatpush1.xpose.msra.mxu0 0.0
      %619 = vmatprep.subr.mxu0 0.0
      %620 = vmatpush1.xpose.msra.mxu0 0.0
      %621 = vmatprep.subr.mxu0 0.0
      %622 = vmatpush1.xpose.msra.mxu0 0.0
      %623 = vmatprep.subr.mxu0 0.0
      %624 = vmatpush1.xpose.msra.mxu0 0.0
      %625 = vmatprep.subr.mxu0 0.0
      %626 = vmatpush1.xpose.msra.mxu0 0.0
      %627 = vmatprep.subr.mxu0 0.0
      %628 = vmatpush1.xpose.msra.mxu0 0.0
      %629 = vmatprep.subr.mxu0 0.0
      %630 = vmatpush1.xpose.msra.mxu0 0.0
      %631 = vmatprep.subr.mxu0 0.0
      %632 = vmatpush1.xpose.msra.mxu0 0.0
      %633 = vmatprep.subr.mxu0 0.0
      %634 = vmatpush1.xpose.msra.mxu0 0.0
      %635 = vmatprep.subr.mxu0 0.0
      %636 = vmatpush1.xpose.msra.mxu0 0.0
      %637 = vmatprep.subr.mxu0 0.0
      %638 = vmatpush1.xpose.msra.mxu0 0.0
      %639 = vmatprep.subr.mxu0 0.0
      %640 = vmatpush1.xpose.msra.mxu0 0.0
      %641 = vmatprep.subr.mxu0 0.0
      %642 = vmatpush1.xpose.msra.mxu0 0.0
      %643 = vmatprep.subr.mxu0 0.0
      %644 = vmatpush1.xpose.msra.mxu0 0.0
      %645 = vmatprep.subr.mxu0 0.0
      %646 = vmatpush1.xpose.msra.mxu0 0.0
      %647 = vmatprep.subr.mxu0 0.0
      %648 = vmatpush1.xpose.msra.mxu0 %v118
      %649 = vmatprep.subr.mxu0 0.0
      %650 = vmatpush2.xpose.msra.mxu0 0.0
      %651 = vmatprep.subr.mxu0 0.0
      %652 = vmatpush2.xpose.msra.mxu0 0.0
      %653 = vmatprep.subr.mxu0 0.0
      %654 = vmatpush2.xpose.msra.mxu0 0.0
      %655 = vmatprep.subr.mxu0 0.0
      %656 = vmatpush2.xpose.msra.mxu0 0.0
      %657 = vmatprep.subr.mxu0 0.0
      %658 = vmatpush2.xpose.msra.mxu0 0.0
      %659 = vmatprep.subr.mxu0 0.0
      %660 = vmatpush2.xpose.msra.mxu0 0.0
      %661 = vmatprep.subr.mxu0 0.0
      %662 = vmatpush2.xpose.msra.mxu0 0.0
      %663 = vmatprep.subr.mxu0 0.0
      %664 = vmatpush2.xpose.msra.mxu0 0.0
      %665 = vmatprep.subr.mxu0 0.0
      %666 = vmatpush2.xpose.msra.mxu0 0.0
      %667 = vmatprep.subr.mxu0 0.0
      %668 = vmatpush2.xpose.msra.mxu0 0.0
      %669 = vmatprep.subr.mxu0 0.0
      %670 = vmatpush2.xpose.msra.mxu0 0.0
      %671 = vmatprep.subr.mxu0 0.0
      %672 = vmatpush2.xpose.msra.mxu0 0.0
      %673 = vmatprep.subr.mxu0 0.0
      %674 = vmatpush2.xpose.msra.mxu0 0.0
      %675 = vmatprep.subr.mxu0 0.0
      %676 = vmatpush2.xpose.msra.mxu0 0.0
      %677 = vmatprep.subr.mxu0 0.0
      %678 = vmatpush2.xpose.msra.mxu0 0.0
      %679 = vmatprep.subr.mxu0 0.0
      %680 = vmatpush2.xpose.msra.mxu0 0.0
      %681 = vmatprep.mubr.f32.mxu0 0.0
      %682 = vmatmul.mubr.f32.gmra.mxu0 %v583
      %v683 = vpop.f32.mrf.mxu0
      %v684 = vadd.f32 0.0, %v683
      %v685 = vpop.f32.mrf.mxu0
      %686 = vdwg.mxu0
      %687 = vmatprep.subr.mxu0 0.0
      %688 = vmatpush1.xpose.msra.mxu0 0.0
      %689 = vmatprep.subr.mxu0 0.0
      %690 = vmatpush1.xpose.msra.mxu0 0.0
      %691 = vmatprep.subr.mxu0 0.0
      %692 = vmatpush1.xpose.msra.mxu0 0.0
      %693 = vmatprep.subr.mxu0 0.0
      %694 = vmatpush1.xpose.msra.mxu0 0.0
      %695 = vmatprep.subr.mxu0 0.0
      %696 = vmatpush1.xpose.msra.mxu0 0.0
      %697 = vmatprep.subr.mxu0 0.0
      %698 = vmatpush1.xpose.msra.mxu0 0.0
      %699 = vmatprep.subr.mxu0 0.0
      %700 = vmatpush1.xpose.msra.mxu0 0.0
      %701 = vmatprep.subr.mxu0 0.0
      %702 = vmatpush1.xpose.msra.mxu0 0.0
      %703 = vmatprep.subr.mxu0 0.0
      %704 = vmatpush1.xpose.msra.mxu0 0.0
      %705 = vmatprep.subr.mxu0 0.0
      %706 = vmatpush1.xpose.msra.mxu0 0.0
      %707 = vmatprep.subr.mxu0 0.0
      %708 = vmatpush1.xpose.msra.mxu0 0.0
      %709 = vmatprep.subr.mxu0 0.0
      %710 = vmatpush1.xpose.msra.mxu0 0.0
      %711 = vmatprep.subr.mxu0 0.0
      %712 = vmatpush1.xpose.msra.mxu0 0.0
      %713 = vmatprep.subr.mxu0 0.0
      %714 = vmatpush1.xpose.msra.mxu0 0.0
      %715 = vmatprep.subr.mxu0 0.0
      %716 = vmatpush1.xpose.msra.mxu0 0.0
      %717 = vmatprep.subr.mxu0 0.0
      %718 = vmatpush1.xpose.msra.mxu0 %v119
      %719 = vmatprep.subr.mxu0 0.0
      %720 = vmatpush2.xpose.msra.mxu0 0.0
      %721 = vmatprep.subr.mxu0 0.0
      %722 = vmatpush2.xpose.msra.mxu0 0.0
      %723 = vmatprep.subr.mxu0 0.0
      %724 = vmatpush2.xpose.msra.mxu0 0.0
      %725 = vmatprep.subr.mxu0 0.0
      %726 = vmatpush2.xpose.msra.mxu0 0.0
      %727 = vmatprep.subr.mxu0 0.0
      %728 = vmatpush2.xpose.msra.mxu0 0.0
      %729 = vmatprep.subr.mxu0 0.0
      %730 = vmatpush2.xpose.msra.mxu0 0.0
      %731 = vmatprep.subr.mxu0 0.0
      %732 = vmatpush2.xpose.msra.mxu0 0.0
      %733 = vmatprep.subr.mxu0 0.0
      %734 = vmatpush2.xpose.msra.mxu0 0.0
      %735 = vmatprep.subr.mxu0 0.0
      %736 = vmatpush2.xpose.msra.mxu0 0.0
      %737 = vmatprep.subr.mxu0 0.0
      %738 = vmatpush2.xpose.msra.mxu0 0.0
      %739 = vmatprep.subr.mxu0 0.0
      %740 = vmatpush2.xpose.msra.mxu0 0.0
      %741 = vmatprep.subr.mxu0 0.0
      %742 = vmatpush2.xpose.msra.mxu0 0.0
      %743 = vmatprep.subr.mxu0 0.0
      %744 = vmatpush2.xpose.msra.mxu0 0.0
      %745 = vmatprep.subr.mxu0 0.0
      %746 = vmatpush2.xpose.msra.mxu0 0.0
      %747 = vmatprep.subr.mxu0 0.0
      %748 = vmatpush2.xpose.msra.mxu0 0.0
      %749 = vmatprep.subr.mxu0 0.0
      %750 = vmatpush2.xpose.msra.mxu0 0.0
      %751 = vmatprep.mubr.f32.mxu0 0.0
      %752 = vmatmul.mubr.f32.gmra.mxu0 %v597
      %v753 = vpop.f32.mrf.mxu0
      %v754 = vadd.f32 0.0, %v753
      %v755 = vpop.f32.mrf.mxu0
      %756 = vdwg.mxu0
      %757 = vmatprep.subr.mxu0 0.0
      %758 = vmatpush1.xpose.msra.mxu0 0.0
      %759 = vmatprep.subr.mxu0 0.0
      %760 = vmatpush1.xpose.msra.mxu0 0.0
      %761 = vmatprep.subr.mxu0 0.0
      %762 = vmatpush1.xpose.msra.mxu0 0.0
      %763 = vmatprep.subr.mxu0 0.0
      %764 = vmatpush1.xpose.msra.mxu0 0.0
      %765 = vmatprep.subr.mxu0 0.0
      %766 = vmatpush1.xpose.msra.mxu0 0.0
      %767 = vmatprep.subr.mxu0 0.0
      %768 = vmatpush1.xpose.msra.mxu0 0.0
      %769 = vmatprep.subr.mxu0 0.0
      %770 = vmatpush1.xpose.msra.mxu0 0.0
      %771 = vmatprep.subr.mxu0 0.0
      %772 = vmatpush1.xpose.msra.mxu0 0.0
      %773 = vmatprep.subr.mxu0 0.0
      %774 = vmatpush1.xpose.msra.mxu0 0.0
      %775 = vmatprep.subr.mxu0 0.0
      %776 = vmatpush1.xpose.msra.mxu0 0.0
      %777 = vmatprep.subr.mxu0 0.0
      %778 = vmatpush1.xpose.msra.mxu0 0.0
      %779 = vmatprep.subr.mxu0 0.0
      %780 = vmatpush1.xpose.msra.mxu0 0.0
      %781 = vmatprep.subr.mxu0 0.0
      %782 = vmatpush1.xpose.msra.mxu0 0.0
      %783 = vmatprep.subr.mxu0 0.0
      %784 = vmatpush1.xpose.msra.mxu0 0.0
      %785 = vmatprep.subr.mxu0 0.0
      %786 = vmatpush1.xpose.msra.mxu0 0.0
      %787 = vmatprep.subr.mxu0 0.0
      %788 = vmatpush1.xpose.msra.mxu0 %v120
      %789 = vmatprep.subr.mxu0 0.0
      %790 = vmatpush2.xpose.msra.mxu0 0.0
      %791 = vmatprep.subr.mxu0 0.0
      %792 = vmatpush2.xpose.msra.mxu0 0.0
      %793 = vmatprep.subr.mxu0 0.0
      %794 = vmatpush2.xpose.msra.mxu0 0.0
      %795 = vmatprep.subr.mxu0 0.0
      %796 = vmatpush2.xpose.msra.mxu0 0.0
      %797 = vmatprep.subr.mxu0 0.0
      %798 = vmatpush2.xpose.msra.mxu0 0.0
      %799 = vmatprep.subr.mxu0 0.0
      %800 = vmatpush2.xpose.msra.mxu0 0.0
      %801 = vmatprep.subr.mxu0 0.0
      %802 = vmatpush2.xpose.msra.mxu0 0.0
      %803 = vmatprep.subr.mxu0 0.0
      %804 = vmatpush2.xpose.msra.mxu0 0.0
      %805 = vmatprep.subr.mxu0 0.0
      %806 = vmatpush2.xpose.msra.mxu0 0.0
      %807 = vmatprep.subr.mxu0 0.0
      %808 = vmatpush2.xpose.msra.mxu0 0.0
      %809 = vmatprep.subr.mxu0 0.0
      %810 = vmatpush2.xpose.msra.mxu0 0.0
      %811 = vmatprep.subr.mxu0 0.0
      %812 = vmatpush2.xpose.msra.mxu0 0.0
      %813 = vmatprep.subr.mxu0 0.0
      %814 = vmatpush2.xpose.msra.mxu0 0.0
      %815 = vmatprep.subr.mxu0 0.0
      %816 = vmatpush2.xpose.msra.mxu0 0.0
      %817 = vmatprep.subr.mxu0 0.0
      %818 = vmatpush2.xpose.msra.mxu0 0.0
      %819 = vmatprep.subr.mxu0 0.0
      %820 = vmatpush2.xpose.msra.mxu0 0.0
      %821 = vmatprep.mubr.f32.mxu0 0.0
      %822 = vmatmul.mubr.f32.gmra.mxu0 %v605
      %v823 = vpop.f32.mrf.mxu0
      %v824 = vadd.f32 0.0, %v823
      %v825 = vpop.f32.mrf.mxu0
      %826 = vdwg.mxu0
      %827 = vmatprep.subr.mxu0 0.0
      %828 = vmatpush1.xpose.msra.mxu0 0.0
      %829 = vmatprep.subr.mxu0 0.0
      %830 = vmatpush1.xpose.msra.mxu0 0.0
      %831 = vmatprep.subr.mxu0 0.0
      %832 = vmatpush1.xpose.msra.mxu0 0.0
      %833 = vmatprep.subr.mxu0 0.0
      %834 = vmatpush1.xpose.msra.mxu0 0.0
      %835 = vmatprep.subr.mxu0 0.0
      %836 = vmatpush1.xpose.msra.mxu0 0.0
      %837 = vmatprep.subr.mxu0 0.0
      %838 = vmatpush1.xpose.msra.mxu0 0.0
      %839 = vmatprep.subr.mxu0 0.0
      %840 = vmatpush1.xpose.msra.mxu0 0.0
      %841 = vmatprep.subr.mxu0 0.0
      %842 = vmatpush1.xpose.msra.mxu0 0.0
      %843 = vmatprep.subr.mxu0 0.0
      %844 = vmatpush1.xpose.msra.mxu0 0.0
      %845 = vmatprep.subr.mxu0 0.0
      %846 = vmatpush1.xpose.msra.mxu0 0.0
      %847 = vmatprep.subr.mxu0 0.0
      %848 = vmatpush1.xpose.msra.mxu0 0.0
      %849 = vmatprep.subr.mxu0 0.0
      %850 = vmatpush1.xpose.msra.mxu0 0.0
      %851 = vmatprep.subr.mxu0 0.0
      %852 = vmatpush1.xpose.msra.mxu0 0.0
      %853 = vmatprep.subr.mxu0 0.0
      %854 = vmatpush1.xpose.msra.mxu0 0.0
      %855 = vmatprep.subr.mxu0 0.0
      %856 = vmatpush1.xpose.msra.mxu0 0.0
      %857 = vmatprep.subr.mxu0 0.0
      %858 = vmatpush1.xpose.msra.mxu0 %v121
      %859 = vmatprep.subr.mxu0 0.0
      %860 = vmatpush2.xpose.msra.mxu0 0.0
      %861 = vmatprep.subr.mxu0 0.0
      %862 = vmatpush2.xpose.msra.mxu0 0.0
      %863 = vmatprep.subr.mxu0 0.0
      %864 = vmatpush2.xpose.msra.mxu0 0.0
      %865 = vmatprep.subr.mxu0 0.0
      %866 = vmatpush2.xpose.msra.mxu0 0.0
      %867 = vmatprep.subr.mxu0 0.0
      %868 = vmatpush2.xpose.msra.mxu0 0.0
      %869 = vmatprep.subr.mxu0 0.0
      %870 = vmatpush2.xpose.msra.mxu0 0.0
      %871 = vmatprep.subr.mxu0 0.0
      %872 = vmatpush2.xpose.msra.mxu0 0.0
      %873 = vmatprep.subr.mxu0 0.0
      %874 = vmatpush2.xpose.msra.mxu0 0.0
      %875 = vmatprep.subr.mxu0 0.0
      %876 = vmatpush2.xpose.msra.mxu0 0.0
      %877 = vmatprep.subr.mxu0 0.0
      %878 = vmatpush2.xpose.msra.mxu0 0.0
      %879 = vmatprep.subr.mxu0 0.0
      %880 = vmatpush2.xpose.msra.mxu0 0.0
      %881 = vmatprep.subr.mxu0 0.0
      %882 = vmatpush2.xpose.msra.mxu0 0.0
      %883 = vmatprep.subr.mxu0 0.0
      %884 = vmatpush2.xpose.msra.mxu0 0.0
      %885 = vmatprep.subr.mxu0 0.0
      %886 = vmatpush2.xpose.msra.mxu0 0.0
      %887 = vmatprep.subr.mxu0 0.0
      %888 = vmatpush2.xpose.msra.mxu0 0.0
      %889 = vmatprep.subr.mxu0 0.0
      %890 = vmatpush2.xpose.msra.mxu0 0.0
      %891 = vmatprep.mubr.f32.mxu0 0.0
      %892 = vmatmul.mubr.f32.gmra.mxu0 %v607
      %v893 = vpop.f32.mrf.mxu0
      %v894 = vadd.f32 0.0, %v893
      %v895 = vpop.f32.mrf.mxu0
      %896 = vdwg.mxu0
      %897 = vmatprep.subr.mxu0 0.0
      %898 = vmatpush1.xpose.msra.mxu0 0.0
      %899 = vmatprep.subr.mxu0 0.0
      %900 = vmatpush1.xpose.msra.mxu0 0.0
      %901 = vmatprep.subr.mxu0 0.0
      %902 = vmatpush1.xpose.msra.mxu0 0.0
      %903 = vmatprep.subr.mxu0 0.0
      %904 = vmatpush1.xpose.msra.mxu0 0.0
      %905 = vmatprep.subr.mxu0 0.0
      %906 = vmatpush1.xpose.msra.mxu0 0.0
      %907 = vmatprep.subr.mxu0 0.0
      %908 = vmatpush1.xpose.msra.mxu0 0.0
      %909 = vmatprep.subr.mxu0 0.0
      %910 = vmatpush1.xpose.msra.mxu0 0.0
      %911 = vmatprep.subr.mxu0 0.0
      %912 = vmatpush1.xpose.msra.mxu0 0.0
      %913 = vmatprep.subr.mxu0 0.0
      %914 = vmatpush1.xpose.msra.mxu0 0.0
      %915 = vmatprep.subr.mxu0 0.0
      %916 = vmatpush1.xpose.msra.mxu0 0.0
      %917 = vmatprep.subr.mxu0 0.0
      %918 = vmatpush1.xpose.msra.mxu0 0.0
      %919 = vmatprep.subr.mxu0 0.0
      %920 = vmatpush1.xpose.msra.mxu0 0.0
      %921 = vmatprep.subr.mxu0 0.0
      %922 = vmatpush1.xpose.msra.mxu0 0.0
      %923 = vmatprep.subr.mxu0 0.0
      %924 = vmatpush1.xpose.msra.mxu0 0.0
      %925 = vmatprep.subr.mxu0 0.0
      %926 = vmatpush1.xpose.msra.mxu0 0.0
      %927 = vmatprep.subr.mxu0 0.0
      %928 = vmatpush1.xpose.msra.mxu0 %v122
      %929 = vmatprep.subr.mxu0 0.0
      %930 = vmatpush2.xpose.msra.mxu0 0.0
      %931 = vmatprep.subr.mxu0 0.0
      %932 = vmatpush2.xpose.msra.mxu0 0.0
      %933 = vmatprep.subr.mxu0 0.0
      %934 = vmatpush2.xpose.msra.mxu0 0.0
      %935 = vmatprep.subr.mxu0 0.0
      %936 = vmatpush2.xpose.msra.mxu0 0.0
      %937 = vmatprep.subr.mxu0 0.0
      %938 = vmatpush2.xpose.msra.mxu0 0.0
      %939 = vmatprep.subr.mxu0 0.0
      %940 = vmatpush2.xpose.msra.mxu0 0.0
      %941 = vmatprep.subr.mxu0 0.0
      %942 = vmatpush2.xpose.msra.mxu0 0.0
      %943 = vmatprep.subr.mxu0 0.0
      %944 = vmatpush2.xpose.msra.mxu0 0.0
      %945 = vmatprep.subr.mxu0 0.0
      %946 = vmatpush2.xpose.msra.mxu0 0.0
      %947 = vmatprep.subr.mxu0 0.0
      %948 = vmatpush2.xpose.msra.mxu0 0.0
      %949 = vmatprep.subr.mxu0 0.0
      %950 = vmatpush2.xpose.msra.mxu0 0.0
      %951 = vmatprep.subr.mxu0 0.0
      %952 = vmatpush2.xpose.msra.mxu0 0.0
      %953 = vmatprep.subr.mxu0 0.0
      %954 = vmatpush2.xpose.msra.mxu0 0.0
      %955 = vmatprep.subr.mxu0 0.0
      %956 = vmatpush2.xpose.msra.mxu0 0.0
      %957 = vmatprep.subr.mxu0 0.0
      %958 = vmatpush2.xpose.msra.mxu0 0.0
      %959 = vmatprep.subr.mxu0 0.0
      %960 = vmatpush2.xpose.msra.mxu0 0.0
      %961 = vmatprep.mubr.f32.mxu0 0.0
      %962 = vmatmul.mubr.f32.gmra.mxu0 %v590
      %v963 = vpop.f32.mrf.mxu0
      %v964 = vadd.f32 0.0, %v963
      %v965 = vpop.f32.mrf.mxu0
      %966 = vdwg.mxu0
      %967 = vmatprep.subr.mxu0 0.0
      %968 = vmatpush1.xpose.msra.mxu0 0.0
      %969 = vmatprep.subr.mxu0 0.0
      %970 = vmatpush1.xpose.msra.mxu0 0.0
      %971 = vmatprep.subr.mxu0 0.0
      %972 = vmatpush1.xpose.msra.mxu0 0.0
      %973 = vmatprep.subr.mxu0 0.0
      %974 = vmatpush1.xpose.msra.mxu0 0.0
      %975 = vmatprep.subr.mxu0 0.0
      %976 = vmatpush1.xpose.msra.mxu0 0.0
      %977 = vmatprep.subr.mxu0 0.0
      %978 = vmatpush1.xpose.msra.mxu0 0.0
      %979 = vmatprep.subr.mxu0 0.0
      %980 = vmatpush1.xpose.msra.mxu0 0.0
      %981 = vmatprep.subr.mxu0 0.0
      %982 = vmatpush1.xpose.msra.mxu0 0.0
      %983 = vmatprep.subr.mxu0 0.0
      %984 = vmatpush1.xpose.msra.mxu0 0.0
      %985 = vmatprep.subr.mxu0 0.0
      %986 = vmatpush1.xpose.msra.mxu0 0.0
      %987 = vmatprep.subr.mxu0 0.0
      %988 = vmatpush1.xpose.msra.mxu0 0.0
      %989 = vmatprep.subr.mxu0 0.0
      %990 = vmatpush1.xpose.msra.mxu0 0.0
      %991 = vmatprep.subr.mxu0 0.0
      %992 = vmatpush1.xpose.msra.mxu0 0.0
      %993 = vmatprep.subr.mxu0 0.0
      %994 = vmatpush1.xpose.msra.mxu0 0.0
      %995 = vmatprep.subr.mxu0 0.0
      %996 = vmatpush1.xpose.msra.mxu0 0.0
      %997 = vmatprep.subr.mxu0 0.0
      %998 = vmatpush1.xpose.msra.mxu0 %v123
      %999 = vmatprep.subr.mxu0 0.0
      %1000 = vmatpush2.xpose.msra.mxu0 0.0
      %1001 = vmatprep.subr.mxu0 0.0
      %1002 = vmatpush2.xpose.msra.mxu0 0.0
      %1003 = vmatprep.subr.mxu0 0.0
      %1004 = vmatpush2.xpose.msra.mxu0 0.0
      %1005 = vmatprep.subr.mxu0 0.0
      %1006 = vmatpush2.xpose.msra.mxu0 0.0
      %1007 = vmatprep.subr.mxu0 0.0
      %1008 = vmatpush2.xpose.msra.mxu0 0.0
      %1009 = vmatprep.subr.mxu0 0.0
      %1010 = vmatpush2.xpose.msra.mxu0 0.0
      %1011 = vmatprep.subr.mxu0 0.0
      %1012 = vmatpush2.xpose.msra.mxu0 0.0
      %1013 = vmatprep.subr.mxu0 0.0
      %1014 = vmatpush2.xpose.msra.mxu0 0.0
      %1015 = vmatprep.subr.mxu0 0.0
      %1016 = vmatpush2.xpose.msra.mxu0 0.0
      %1017 = vmatprep.subr.mxu0 0.0
      %1018 = vmatpush2.xpose.msra.mxu0 0.0
      %1019 = vmatprep.subr.mxu0 0.0
      %1020 = vmatpush2.xpose.msra.mxu0 0.0
      %1021 = vmatprep.subr.mxu0 0.0
      %1022 = vmatpush2.xpose.msra.mxu0 0.0
      %1023 = vmatprep.subr.mxu0 0.0
      %1024 = vmatpush2.xpose.msra.mxu0 0.0
      %1025 = vmatprep.subr.mxu0 0.0
      %1026 = vmatpush2.xpose.msra.mxu0 0.0
      %1027 = vmatprep.subr.mxu0 0.0
      %1028 = vmatpush2.xpose.msra.mxu0 0.0
      %1029 = vmatprep.subr.mxu0 0.0
      %1030 = vmatpush2.xpose.msra.mxu0 0.0
      %1031 = vmatprep.mubr.f32.mxu0 0.0
      %1032 = vmatmul.mubr.f32.gmra.mxu0 %v604
      %v1033 = vpop.f32.mrf.mxu0
      %v1034 = vadd.f32 0.0, %v1033
      %v1035 = vpop.f32.mrf.mxu0
      %1036 = vdwg.mxu0
      %1037 = vmatprep.subr.mxu0 0.0
      %1038 = vmatpush1.xpose.msra.mxu0 0.0
      %1039 = vmatprep.subr.mxu0 0.0
      %1040 = vmatpush1.xpose.msra.mxu0 0.0
      %1041 = vmatprep.subr.mxu0 0.0
      %1042 = vmatpush1.xpose.msra.mxu0 0.0
      %1043 = vmatprep.subr.mxu0 0.0
      %1044 = vmatpush1.xpose.msra.mxu0 0.0
      %1045 = vmatprep.subr.mxu0 0.0
      %1046 = vmatpush1.xpose.msra.mxu0 0.0
      %1047 = vmatprep.subr.mxu0 0.0
      %1048 = vmatpush1.xpose.msra.mxu0 0.0
      %1049 = vmatprep.subr.mxu0 0.0
      %1050 = vmatpush1.xpose.msra.mxu0 0.0
      %1051 = vmatprep.subr.mxu0 0.0
      %1052 = vmatpush1.xpose.msra.mxu0 0.0
      %1053 = vmatprep.subr.mxu0 0.0
      %1054 = vmatpush1.xpose.msra.mxu0 0.0
      %1055 = vmatprep.subr.mxu0 0.0
      %1056 = vmatpush1.xpose.msra.mxu0 0.0
      %1057 = vmatprep.subr.mxu0 0.0
      %1058 = vmatpush1.xpose.msra.mxu0 0.0
      %1059 = vmatprep.subr.mxu0 0.0
      %1060 = vmatpush1.xpose.msra.mxu0 0.0
      %1061 = vmatprep.subr.mxu0 0.0
      %1062 = vmatpush1.xpose.msra.mxu0 0.0
      %1063 = vmatprep.subr.mxu0 0.0
      %1064 = vmatpush1.xpose.msra.mxu0 0.0
      %1065 = vmatprep.subr.mxu0 0.0
      %1066 = vmatpush1.xpose.msra.mxu0 0.0
      %1067 = vmatprep.subr.mxu0 0.0
      %1068 = vmatpush1.xpose.msra.mxu0 %v124
      %1069 = vmatprep.subr.mxu0 0.0
      %1070 = vmatpush2.xpose.msra.mxu0 0.0
      %1071 = vmatprep.subr.mxu0 0.0
      %1072 = vmatpush2.xpose.msra.mxu0 0.0
      %1073 = vmatprep.subr.mxu0 0.0
      %1074 = vmatpush2.xpose.msra.mxu0 0.0
      %1075 = vmatprep.subr.mxu0 0.0
      %1076 = vmatpush2.xpose.msra.mxu0 0.0
      %1077 = vmatprep.subr.mxu0 0.0
      %1078 = vmatpush2.xpose.msra.mxu0 0.0
      %1079 = vmatprep.subr.mxu0 0.0
      %1080 = vmatpush2.xpose.msra.mxu0 0.0
      %1081 = vmatprep.subr.mxu0 0.0
      %1082 = vmatpush2.xpose.msra.mxu0 0.0
      %1083 = vmatprep.subr.mxu0 0.0
      %1084 = vmatpush2.xpose.msra.mxu0 0.0
      %1085 = vmatprep.subr.mxu0 0.0
      %1086 = vmatpush2.xpose.msra.mxu0 0.0
      %1087 = vmatprep.subr.mxu0 0.0
      %1088 = vmatpush2.xpose.msra.mxu0 0.0
      %1089 = vmatprep.subr.mxu0 0.0
      %1090 = vmatpush2.xpose.msra.mxu0 0.0
      %1091 = vmatprep.subr.mxu0 0.0
      %1092 = vmatpush2.xpose.msra.mxu0 0.0
      %1093 = vmatprep.subr.mxu0 0.0
      %1094 = vmatpush2.xpose.msra.mxu0 0.0
      %1095 = vmatprep.subr.mxu0 0.0
      %1096 = vmatpush2.xpose.msra.mxu0 0.0
      %1097 = vmatprep.subr.mxu0 0.0
      %1098 = vmatpush2.xpose.msra.mxu0 0.0
      %1099 = vmatprep.subr.mxu0 0.0
      %1100 = vmatpush2.xpose.msra.mxu0 0.0
      %1101 = vmatprep.mubr.f32.mxu0 0.0
      %1102 = vmatmul.mubr.f32.gmra.mxu0 %v606
      %v1103 = vpop.f32.mrf.mxu0
      %v1104 = vadd.f32 0.0, %v1103
      %v1105 = vpop.f32.mrf.mxu0
      %1106 = vdwg.mxu0
      %1107 = vmatprep.subr.mxu0 0.0
      %1108 = vmatpush1.xpose.msra.mxu0 0.0
      %1109 = vmatprep.subr.mxu0 0.0
      %1110 = vmatpush1.xpose.msra.mxu0 0.0
      %1111 = vmatprep.subr.mxu0 0.0
      %1112 = vmatpush1.xpose.msra.mxu0 0.0
      %1113 = vmatprep.subr.mxu0 0.0
      %1114 = vmatpush1.xpose.msra.mxu0 0.0
      %1115 = vmatprep.subr.mxu0 0.0
      %1116 = vmatpush1.xpose.msra.mxu0 0.0
      %1117 = vmatprep.subr.mxu0 0.0
      %1118 = vmatpush1.xpose.msra.mxu0 0.0
      %1119 = vmatprep.subr.mxu0 0.0
      %1120 = vmatpush1.xpose.msra.mxu0 0.0
      %1121 = vmatprep.subr.mxu0 0.0
      %1122 = vmatpush1.xpose.msra.mxu0 0.0
      %1123 = vmatprep.subr.mxu0 0.0
      %1124 = vmatpush1.xpose.msra.mxu0 0.0
      %1125 = vmatprep.subr.mxu0 0.0
      %1126 = vmatpush1.xpose.msra.mxu0 0.0
      %1127 = vmatprep.subr.mxu0 0.0
      %1128 = vmatpush1.xpose.msra.mxu0 0.0
      %1129 = vmatprep.subr.mxu0 0.0
      %1130 = vmatpush1.xpose.msra.mxu0 0.0
      %1131 = vmatprep.subr.mxu0 0.0
      %1132 = vmatpush1.xpose.msra.mxu0 0.0
      %1133 = vmatprep.subr.mxu0 0.0
      %1134 = vmatpush1.xpose.msra.mxu0 0.0
      %1135 = vmatprep.subr.mxu0 0.0
      %1136 = vmatpush1.xpose.msra.mxu0 0.0
      %1137 = vmatprep.subr.mxu0 0.0
      %1138 = vmatpush1.xpose.msra.mxu0 %v125
      %1139 = vmatprep.subr.mxu0 0.0
      %1140 = vmatpush2.xpose.msra.mxu0 0.0
      %1141 = vmatprep.subr.mxu0 0.0
      %1142 = vmatpush2.xpose.msra.mxu0 0.0
      %1143 = vmatprep.subr.mxu0 0.0
      %1144 = vmatpush2.xpose.msra.mxu0 0.0
      %1145 = vmatprep.subr.mxu0 0.0
      %1146 = vmatpush2.xpose.msra.mxu0 0.0
      %1147 = vmatprep.subr.mxu0 0.0
      %1148 = vmatpush2.xpose.msra.mxu0 0.0
      %1149 = vmatprep.subr.mxu0 0.0
      %1150 = vmatpush2.xpose.msra.mxu0 0.0
      %1151 = vmatprep.subr.mxu0 0.0
      %1152 = vmatpush2.xpose.msra.mxu0 0.0
      %1153 = vmatprep.subr.mxu0 0.0
      %1154 = vmatpush2.xpose.msra.mxu0 0.0
      %1155 = vmatprep.subr.mxu0 0.0
      %1156 = vmatpush2.xpose.msra.mxu0 0.0
      %1157 = vmatprep.subr.mxu0 0.0
      %1158 = vmatpush2.xpose.msra.mxu0 0.0
      %1159 = vmatprep.subr.mxu0 0.0
      %1160 = vmatpush2.xpose.msra.mxu0 0.0
      %1161 = vmatprep.subr.mxu0 0.0
      %1162 = vmatpush2.xpose.msra.mxu0 0.0
      %1163 = vmatprep.subr.mxu0 0.0
      %1164 = vmatpush2.xpose.msra.mxu0 0.0
      %1165 = vmatprep.subr.mxu0 0.0
      %1166 = vmatpush2.xpose.msra.mxu0 0.0
      %1167 = vmatprep.subr.mxu0 0.0
      %1168 = vmatpush2.xpose.msra.mxu0 0.0
      %1169 = vmatprep.subr.mxu0 0.0
      %1170 = vmatpush2.xpose.msra.mxu0 0.0
      %1171 = vmatprep.mubr.f32.mxu0 0.0
      %1172 = vmatmul.mubr.f32.gmra.mxu0 %v608
      %v1173 = vpop.f32.mrf.mxu0
      %v1174 = vadd.f32 0.0, %v1173
      %v1175 = vpop.f32.mrf.mxu0
      %1176 = vdwg.mxu0
      %v1177 = vlaneseq
      %v1178 = vand.u32 %v1177, 127
      %vm1179 = vcmp.lt.s32.totalorder %v1178, 8
      %v1180 = vsel %vm1179, %v684, -inf
      %v1181 = vsel %vm1179, %v754, -inf
      %v1182 = vsel %vm1179, %v824, -inf
      %v1183 = vsel %vm1179, %v894, -inf
      %v1184 = vsel %vm1179, %v964, -inf
      %v1185 = vsel %vm1179, %v1034, -inf
      %v1186 = vsel %vm1179, %v1104, -inf
      %v1187 = vsel %vm1179, %v1174, -inf
      %vm1188 = vcmask 57344
      %v1189 = vsel %vm1188, %v1180, -inf
      %1190 = vmax.xlane.f32.xlu0 %v1189
      %v1191 = vpop.xlane.xlu0 %1190
      %v1192 = vsel %vm1188, %v1181, -inf
      %1193 = vmax.xlane.f32.xlu0 %v1192
      %v1194 = vpop.xlane.xlu0 %1193
      %v1195 = vsel %vm1188, %v1182, -inf
      %1196 = vmax.xlane.f32.xlu0 %v1195
      %v1197 = vpop.xlane.xlu0 %1196
      %v1198 = vsel %vm1188, %v1183, -inf
      %1199 = vmax.xlane.f32.xlu0 %v1198
      %v1200 = vpop.xlane.xlu0 %1199
      %v1201 = vsel %vm1188, %v1184, -inf
      %1202 = vmax.xlane.f32.xlu0 %v1201
      %v1203 = vpop.xlane.xlu0 %1202
      %v1204 = vsel %vm1188, %v1185, -inf
      %1205 = vmax.xlane.f32.xlu0 %v1204
      %v1206 = vpop.xlane.xlu0 %1205
      %v1207 = vsel %vm1188, %v1186, -inf
      %1208 = vmax.xlane.f32.xlu0 %v1207
      %v1209 = vpop.xlane.xlu0 %1208
      %v1210 = vsel %vm1188, %v1187, -inf
      %1211 = vmax.xlane.f32.xlu0 %v1210
      %v1212 = vpop.xlane.xlu0 %1211
      %v1213 = vsub.f32 %v1180, %v1191
      %v1214 = vsub.f32 %v1181, %v1194
      %v1215 = vsub.f32 %v1182, %v1197
      %v1216 = vsub.f32 %v1183, %v1200
      %v1217 = vsub.f32 %v1184, %v1203
      %v1218 = vsub.f32 %v1185, %v1206
      %v1219 = vsub.f32 %v1186, %v1209
      %v1220 = vsub.f32 %v1187, %v1212
      %v1221 = vmul.f32 %v1213, 1.442695
      %v1222 = vpow.pop %v1221
      %v1223 = vmul.f32 %v1214, 1.442695
      %v1224 = vpow.pop %v1223
      %v1225 = vmul.f32 %v1215, 1.442695
      %v1226 = vpow.pop %v1225
      %v1227 = vmul.f32 %v1216, 1.442695
      %v1228 = vpow.pop %v1227
      %v1229 = vmul.f32 %v1217, 1.442695
      %v1230 = vpow.pop %v1229
      %v1231 = vmul.f32 %v1218, 1.442695
      %v1232 = vpow.pop %v1231
      %v1233 = vmul.f32 %v1219, 1.442695
      %v1234 = vpow.pop %v1233
      %v1235 = vmul.f32 %v1220, 1.442695
      %v1236 = vpow.pop %v1235
      %v1237 = vsel %vm1188, %v1222, 0.0
      %1238 = vadd.xlane.f32.xlu0 %v1237
      %v1239 = vpop.xlane.xlu0 %1238
      %v1240 = vsel %vm1188, %v1224, 0.0
      %1241 = vadd.xlane.f32.xlu0 %v1240
      %v1242 = vpop.xlane.xlu0 %1241
      %v1243 = vsel %vm1188, %v1226, 0.0
      %1244 = vadd.xlane.f32.xlu0 %v1243
      %v1245 = vpop.xlane.xlu0 %1244
      %v1246 = vsel %vm1188, %v1228, 0.0
      %1247 = vadd.xlane.f32.xlu0 %v1246
      %v1248 = vpop.xlane.xlu0 %1247
      %v1249 = vsel %vm1188, %v1230, 0.0
      %1250 = vadd.xlane.f32.xlu0 %v1249
      %v1251 = vpop.xlane.xlu0 %1250
      %v1252 = vsel %vm1188, %v1232, 0.0
      %1253 = vadd.xlane.f32.xlu0 %v1252
      %v1254 = vpop.xlane.xlu0 %1253
      %v1255 = vsel %vm1188, %v1234, 0.0
      %1256 = vadd.xlane.f32.xlu0 %v1255
      %v1257 = vpop.xlane.xlu0 %1256
      %v1258 = vsel %vm1188, %v1236, 0.0
      %1259 = vadd.xlane.f32.xlu0 %v1258
      %v1260 = vpop.xlane.xlu0 %1259
      %v1261 = vrcp.pop %v1239
      %v1262 = vrcp.pop %v1242
      %v1263 = vrcp.pop %v1245
      %v1264 = vrcp.pop %v1248
      %v1265 = vrcp.pop %v1251
      %v1266 = vrcp.pop %v1254
      %v1267 = vrcp.pop %v1257
      %v1268 = vrcp.pop %v1260
      %v1269 = vmul.f32 %v1222, %v1261
      %v1270 = vmul.f32 %v1224, %v1262
      %v1271 = vmul.f32 %v1226, %v1263
      %v1272 = vmul.f32 %v1228, %v1264
      %v1273 = vmul.f32 %v1230, %v1265
      %v1274 = vmul.f32 %v1232, %v1266
      %v1275 = vmul.f32 %v1234, %v1267
      %v1276 = vmul.f32 %v1236, %v1268
      %vm1277 = vcmask 64512
      %v1279 = vsel %vm1277, %v1269, 0
      %1281 = vmatprep.subr.mxu0 0.0
      %1282 = vmatpush1.msra.mxu0 0.0
      %1283 = vmatprep.subr.mxu0 0.0
      %1284 = vmatpush1.msra.mxu0 0.0
      %1285 = vmatprep.subr.mxu0 0.0
      %1286 = vmatpush1.msra.mxu0 0.0
      %1287 = vmatprep.subr.mxu0 0.0
      %1288 = vmatpush1.msra.mxu0 0.0
      %1289 = vmatprep.subr.mxu0 0.0
      %1290 = vmatpush1.msra.mxu0 0.0
      %1291 = vmatprep.subr.mxu0 0.0
      %1292 = vmatpush1.msra.mxu0 0.0
      %1293 = vmatprep.subr.mxu0 0.0
      %1294 = vmatpush1.msra.mxu0 0.0
      %1295 = vmatprep.subr.mxu0 0.0
      %1296 = vmatpush1.msra.mxu0 0.0
      %1297 = vmatprep.subr.mxu0 0.0
      %1298 = vmatpush1.msra.mxu0 0.0
      %1299 = vmatprep.subr.mxu0 0.0
      %1300 = vmatpush1.msra.mxu0 0.0
      %1301 = vmatprep.subr.mxu0 0.0
      %1302 = vmatpush1.msra.mxu0 0.0
      %1303 = vmatprep.subr.mxu0 0.0
      %1304 = vmatpush1.msra.mxu0 0.0
      %1305 = vmatprep.subr.mxu0 0.0
      %1306 = vmatpush1.msra.mxu0 0.0
      %1307 = vmatprep.subr.mxu0 0.0
      %1308 = vmatpush1.msra.mxu0 0.0
      %1309 = vmatprep.subr.mxu0 0.0
      %1310 = vmatpush1.msra.mxu0 0.0
      %1311 = vmatprep.subr.mxu0 0.0
      %1312 = vmatpush1.msra.mxu0 %v118
      %1313 = vmatprep.subr.mxu0 0.0
      %1314 = vmatpush2.msra.mxu0 0.0
      %1315 = vmatprep.subr.mxu0 0.0
      %1316 = vmatpush2.msra.mxu0 0.0
      %1317 = vmatprep.subr.mxu0 0.0
      %1318 = vmatpush2.msra.mxu0 0.0
      %1319 = vmatprep.subr.mxu0 0.0
      %1320 = vmatpush2.msra.mxu0 0.0
      %1321 = vmatprep.subr.mxu0 0.0
      %1322 = vmatpush2.msra.mxu0 0.0
      %1323 = vmatprep.subr.mxu0 0.0
      %1324 = vmatpush2.msra.mxu0 0.0
      %1325 = vmatprep.subr.mxu0 0.0
      %1326 = vmatpush2.msra.mxu0 0.0
      %1327 = vmatprep.subr.mxu0 0.0
      %1328 = vmatpush2.msra.mxu0 0.0
      %1329 = vmatprep.subr.mxu0 0.0
      %1330 = vmatpush2.msra.mxu0 0.0
      %1331 = vmatprep.subr.mxu0 0.0
      %1332 = vmatpush2.msra.mxu0 0.0
      %1333 = vmatprep.subr.mxu0 0.0
      %1334 = vmatpush2.msra.mxu0 0.0
      %1335 = vmatprep.subr.mxu0 0.0
      %1336 = vmatpush2.msra.mxu0 0.0
      %1337 = vmatprep.subr.mxu0 0.0
      %1338 = vmatpush2.msra.mxu0 0.0
      %1339 = vmatprep.subr.mxu0 0.0
      %1340 = vmatpush2.msra.mxu0 0.0
      %1341 = vmatprep.subr.mxu0 0.0
      %1342 = vmatpush2.msra.mxu0 0.0
      %1343 = vmatprep.subr.mxu0 0.0
      %1344 = vmatpush2.msra.mxu0 0.0
      %1345 = vmatprep.mubr.f32.mxu0 0.0
      %1346 = vmatmul.mubr.f32.gmra.mxu0 %v1279
      %v1347 = vpop.f32.mrf.mxu0
      %v1348 = vadd.f32 0.0, %v1347
      %v1349 = vpop.f32.mrf.mxu0
      %1350 = vdwg.mxu0
      %v1352 = vsel %vm1277, %v1270, 0
      %1354 = vmatprep.subr.mxu0 0.0
      %1355 = vmatpush1.msra.mxu0 0.0
      %1356 = vmatprep.subr.mxu0 0.0
      %1357 = vmatpush1.msra.mxu0 0.0
      %1358 = vmatprep.subr.mxu0 0.0
      %1359 = vmatpush1.msra.mxu0 0.0
      %1360 = vmatprep.subr.mxu0 0.0
      %1361 = vmatpush1.msra.mxu0 0.0
      %1362 = vmatprep.subr.mxu0 0.0
      %1363 = vmatpush1.msra.mxu0 0.0
      %1364 = vmatprep.subr.mxu0 0.0
      %1365 = vmatpush1.msra.mxu0 0.0
      %1366 = vmatprep.subr.mxu0 0.0
      %1367 = vmatpush1.msra.mxu0 0.0
      %1368 = vmatprep.subr.mxu0 0.0
      %1369 = vmatpush1.msra.mxu0 0.0
      %1370 = vmatprep.subr.mxu0 0.0
      %1371 = vmatpush1.msra.mxu0 0.0
      %1372 = vmatprep.subr.mxu0 0.0
      %1373 = vmatpush1.msra.mxu0 0.0
      %1374 = vmatprep.subr.mxu0 0.0
      %1375 = vmatpush1.msra.mxu0 0.0
      %1376 = vmatprep.subr.mxu0 0.0
      %1377 = vmatpush1.msra.mxu0 0.0
      %1378 = vmatprep.subr.mxu0 0.0
      %1379 = vmatpush1.msra.mxu0 0.0
      %1380 = vmatprep.subr.mxu0 0.0
      %1381 = vmatpush1.msra.mxu0 0.0
      %1382 = vmatprep.subr.mxu0 0.0
      %1383 = vmatpush1.msra.mxu0 0.0
      %1384 = vmatprep.subr.mxu0 0.0
      %1385 = vmatpush1.msra.mxu0 %v119
      %1386 = vmatprep.subr.mxu0 0.0
      %1387 = vmatpush2.msra.mxu0 0.0
      %1388 = vmatprep.subr.mxu0 0.0
      %1389 = vmatpush2.msra.mxu0 0.0
      %1390 = vmatprep.subr.mxu0 0.0
      %1391 = vmatpush2.msra.mxu0 0.0
      %1392 = vmatprep.subr.mxu0 0.0
      %1393 = vmatpush2.msra.mxu0 0.0
      %1394 = vmatprep.subr.mxu0 0.0
      %1395 = vmatpush2.msra.mxu0 0.0
      %1396 = vmatprep.subr.mxu0 0.0
      %1397 = vmatpush2.msra.mxu0 0.0
      %1398 = vmatprep.subr.mxu0 0.0
      %1399 = vmatpush2.msra.mxu0 0.0
      %1400 = vmatprep.subr.mxu0 0.0
      %1401 = vmatpush2.msra.mxu0 0.0
      %1402 = vmatprep.subr.mxu0 0.0
      %1403 = vmatpush2.msra.mxu0 0.0
      %1404 = vmatprep.subr.mxu0 0.0
      %1405 = vmatpush2.msra.mxu0 0.0
      %1406 = vmatprep.subr.mxu0 0.0
      %1407 = vmatpush2.msra.mxu0 0.0
      %1408 = vmatprep.subr.mxu0 0.0
      %1409 = vmatpush2.msra.mxu0 0.0
      %1410 = vmatprep.subr.mxu0 0.0
      %1411 = vmatpush2.msra.mxu0 0.0
      %1412 = vmatprep.subr.mxu0 0.0
      %1413 = vmatpush2.msra.mxu0 0.0
      %1414 = vmatprep.subr.mxu0 0.0
      %1415 = vmatpush2.msra.mxu0 0.0
      %1416 = vmatprep.subr.mxu0 0.0
      %1417 = vmatpush2.msra.mxu0 0.0
      %1418 = vmatprep.mubr.f32.mxu0 0.0
      %1419 = vmatmul.mubr.f32.gmra.mxu0 %v1352
      %v1420 = vpop.f32.mrf.mxu0
      %v1421 = vadd.f32 0.0, %v1420
      %v1422 = vpop.f32.mrf.mxu0
      %1423 = vdwg.mxu0
      %v1425 = vsel %vm1277, %v1271, 0
      %1427 = vmatprep.subr.mxu0 0.0
      %1428 = vmatpush1.msra.mxu0 0.0
      %1429 = vmatprep.subr.mxu0 0.0
      %1430 = vmatpush1.msra.mxu0 0.0
      %1431 = vmatprep.subr.mxu0 0.0
      %1432 = vmatpush1.msra.mxu0 0.0
      %1433 = vmatprep.subr.mxu0 0.0
      %1434 = vmatpush1.msra.mxu0 0.0
      %1435 = vmatprep.subr.mxu0 0.0
      %1436 = vmatpush1.msra.mxu0 0.0
      %1437 = vmatprep.subr.mxu0 0.0
      %1438 = vmatpush1.msra.mxu0 0.0
      %1439 = vmatprep.subr.mxu0 0.0
      %1440 = vmatpush1.msra.mxu0 0.0
      %1441 = vmatprep.subr.mxu0 0.0
      %1442 = vmatpush1.msra.mxu0 0.0
      %1443 = vmatprep.subr.mxu0 0.0
      %1444 = vmatpush1.msra.mxu0 0.0
      %1445 = vmatprep.subr.mxu0 0.0
      %1446 = vmatpush1.msra.mxu0 0.0
      %1447 = vmatprep.subr.mxu0 0.0
      %1448 = vmatpush1.msra.mxu0 0.0
      %1449 = vmatprep.subr.mxu0 0.0
      %1450 = vmatpush1.msra.mxu0 0.0
      %1451 = vmatprep.subr.mxu0 0.0
      %1452 = vmatpush1.msra.mxu0 0.0
      %1453 = vmatprep.subr.mxu0 0.0
      %1454 = vmatpush1.msra.mxu0 0.0
      %1455 = vmatprep.subr.mxu0 0.0
      %1456 = vmatpush1.msra.mxu0 0.0
      %1457 = vmatprep.subr.mxu0 0.0
      %1458 = vmatpush1.msra.mxu0 %v120
      %1459 = vmatprep.subr.mxu0 0.0
      %1460 = vmatpush2.msra.mxu0 0.0
      %1461 = vmatprep.subr.mxu0 0.0
      %1462 = vmatpush2.msra.mxu0 0.0
      %1463 = vmatprep.subr.mxu0 0.0
      %1464 = vmatpush2.msra.mxu0 0.0
      %1465 = vmatprep.subr.mxu0 0.0
      %1466 = vmatpush2.msra.mxu0 0.0
      %1467 = vmatprep.subr.mxu0 0.0
      %1468 = vmatpush2.msra.mxu0 0.0
      %1469 = vmatprep.subr.mxu0 0.0
      %1470 = vmatpush2.msra.mxu0 0.0
      %1471 = vmatprep.subr.mxu0 0.0
      %1472 = vmatpush2.msra.mxu0 0.0
      %1473 = vmatprep.subr.mxu0 0.0
      %1474 = vmatpush2.msra.mxu0 0.0
      %1475 = vmatprep.subr.mxu0 0.0
      %1476 = vmatpush2.msra.mxu0 0.0
      %1477 = vmatprep.subr.mxu0 0.0
      %1478 = vmatpush2.msra.mxu0 0.0
      %1479 = vmatprep.subr.mxu0 0.0
      %1480 = vmatpush2.msra.mxu0 0.0
      %1481 = vmatprep.subr.mxu0 0.0
      %1482 = vmatpush2.msra.mxu0 0.0
      %1483 = vmatprep.subr.mxu0 0.0
      %1484 = vmatpush2.msra.mxu0 0.0
      %1485 = vmatprep.subr.mxu0 0.0
      %1486 = vmatpush2.msra.mxu0 0.0
      %1487 = vmatprep.subr.mxu0 0.0
      %1488 = vmatpush2.msra.mxu0 0.0
      %1489 = vmatprep.subr.mxu0 0.0
      %1490 = vmatpush2.msra.mxu0 0.0
      %1491 = vmatprep.mubr.f32.mxu0 0.0
      %1492 = vmatmul.mubr.f32.gmra.mxu0 %v1425
      %v1493 = vpop.f32.mrf.mxu0
      %v1494 = vadd.f32 0.0, %v1493
      %v1495 = vpop.f32.mrf.mxu0
      %1496 = vdwg.mxu0
      %v1498 = vsel %vm1277, %v1272, 0
      %1500 = vmatprep.subr.mxu0 0.0
      %1501 = vmatpush1.msra.mxu0 0.0
      %1502 = vmatprep.subr.mxu0 0.0
      %1503 = vmatpush1.msra.mxu0 0.0
      %1504 = vmatprep.subr.mxu0 0.0
      %1505 = vmatpush1.msra.mxu0 0.0
      %1506 = vmatprep.subr.mxu0 0.0
      %1507 = vmatpush1.msra.mxu0 0.0
      %1508 = vmatprep.subr.mxu0 0.0
      %1509 = vmatpush1.msra.mxu0 0.0
      %1510 = vmatprep.subr.mxu0 0.0
      %1511 = vmatpush1.msra.mxu0 0.0
      %1512 = vmatprep.subr.mxu0 0.0
      %1513 = vmatpush1.msra.mxu0 0.0
      %1514 = vmatprep.subr.mxu0 0.0
      %1515 = vmatpush1.msra.mxu0 0.0
      %1516 = vmatprep.subr.mxu0 0.0
      %1517 = vmatpush1.msra.mxu0 0.0
      %1518 = vmatprep.subr.mxu0 0.0
      %1519 = vmatpush1.msra.mxu0 0.0
      %1520 = vmatprep.subr.mxu0 0.0
      %1521 = vmatpush1.msra.mxu0 0.0
      %1522 = vmatprep.subr.mxu0 0.0
      %1523 = vmatpush1.msra.mxu0 0.0
      %1524 = vmatprep.subr.mxu0 0.0
      %1525 = vmatpush1.msra.mxu0 0.0
      %1526 = vmatprep.subr.mxu0 0.0
      %1527 = vmatpush1.msra.mxu0 0.0
      %1528 = vmatprep.subr.mxu0 0.0
      %1529 = vmatpush1.msra.mxu0 0.0
      %1530 = vmatprep.subr.mxu0 0.0
      %1531 = vmatpush1.msra.mxu0 %v121
      %1532 = vmatprep.subr.mxu0 0.0
      %1533 = vmatpush2.msra.mxu0 0.0
      %1534 = vmatprep.subr.mxu0 0.0
      %1535 = vmatpush2.msra.mxu0 0.0
      %1536 = vmatprep.subr.mxu0 0.0
      %1537 = vmatpush2.msra.mxu0 0.0
      %1538 = vmatprep.subr.mxu0 0.0
      %1539 = vmatpush2.msra.mxu0 0.0
      %1540 = vmatprep.subr.mxu0 0.0
      %1541 = vmatpush2.msra.mxu0 0.0
      %1542 = vmatprep.subr.mxu0 0.0
      %1543 = vmatpush2.msra.mxu0 0.0
      %1544 = vmatprep.subr.mxu0 0.0
      %1545 = vmatpush2.msra.mxu0 0.0
      %1546 = vmatprep.subr.mxu0 0.0
      %1547 = vmatpush2.msra.mxu0 0.0
      %1548 = vmatprep.subr.mxu0 0.0
      %1549 = vmatpush2.msra.mxu0 0.0
      %1550 = vmatprep.subr.mxu0 0.0
      %1551 = vmatpush2.msra.mxu0 0.0
      %1552 = vmatprep.subr.mxu0 0.0
      %1553 = vmatpush2.msra.mxu0 0.0
      %1554 = vmatprep.subr.mxu0 0.0
      %1555 = vmatpush2.msra.mxu0 0.0
      %1556 = vmatprep.subr.mxu0 0.0
      %1557 = vmatpush2.msra.mxu0 0.0
      %1558 = vmatprep.subr.mxu0 0.0
      %1559 = vmatpush2.msra.mxu0 0.0
      %1560 = vmatprep.subr.mxu0 0.0
      %1561 = vmatpush2.msra.mxu0 0.0
      %1562 = vmatprep.subr.mxu0 0.0
      %1563 = vmatpush2.msra.mxu0 0.0
      %1564 = vmatprep.mubr.f32.mxu0 0.0
      %1565 = vmatmul.mubr.f32.gmra.mxu0 %v1498
      %v1566 = vpop.f32.mrf.mxu0
      %v1567 = vadd.f32 0.0, %v1566
      %v1568 = vpop.f32.mrf.mxu0
      %1569 = vdwg.mxu0
      %v1571 = vsel %vm1277, %v1273, 0
      %1573 = vmatprep.subr.mxu0 0.0
      %1574 = vmatpush1.msra.mxu0 0.0
      %1575 = vmatprep.subr.mxu0 0.0
      %1576 = vmatpush1.msra.mxu0 0.0
      %1577 = vmatprep.subr.mxu0 0.0
      %1578 = vmatpush1.msra.mxu0 0.0
      %1579 = vmatprep.subr.mxu0 0.0
      %1580 = vmatpush1.msra.mxu0 0.0
      %1581 = vmatprep.subr.mxu0 0.0
      %1582 = vmatpush1.msra.mxu0 0.0
      %1583 = vmatprep.subr.mxu0 0.0
      %1584 = vmatpush1.msra.mxu0 0.0
      %1585 = vmatprep.subr.mxu0 0.0
      %1586 = vmatpush1.msra.mxu0 0.0
      %1587 = vmatprep.subr.mxu0 0.0
      %1588 = vmatpush1.msra.mxu0 0.0
      %1589 = vmatprep.subr.mxu0 0.0
      %1590 = vmatpush1.msra.mxu0 0.0
      %1591 = vmatprep.subr.mxu0 0.0
      %1592 = vmatpush1.msra.mxu0 0.0
      %1593 = vmatprep.subr.mxu0 0.0
      %1594 = vmatpush1.msra.mxu0 0.0
      %1595 = vmatprep.subr.mxu0 0.0
      %1596 = vmatpush1.msra.mxu0 0.0
      %1597 = vmatprep.subr.mxu0 0.0
      %1598 = vmatpush1.msra.mxu0 0.0
      %1599 = vmatprep.subr.mxu0 0.0
      %1600 = vmatpush1.msra.mxu0 0.0
      %1601 = vmatprep.subr.mxu0 0.0
      %1602 = vmatpush1.msra.mxu0 0.0
      %1603 = vmatprep.subr.mxu0 0.0
      %1604 = vmatpush1.msra.mxu0 %v122
      %1605 = vmatprep.subr.mxu0 0.0
      %1606 = vmatpush2.msra.mxu0 0.0
      %1607 = vmatprep.subr.mxu0 0.0
      %1608 = vmatpush2.msra.mxu0 0.0
      %1609 = vmatprep.subr.mxu0 0.0
      %1610 = vmatpush2.msra.mxu0 0.0
      %1611 = vmatprep.subr.mxu0 0.0
      %1612 = vmatpush2.msra.mxu0 0.0
      %1613 = vmatprep.subr.mxu0 0.0
      %1614 = vmatpush2.msra.mxu0 0.0
      %1615 = vmatprep.subr.mxu0 0.0
      %1616 = vmatpush2.msra.mxu0 0.0
      %1617 = vmatprep.subr.mxu0 0.0
      %1618 = vmatpush2.msra.mxu0 0.0
      %1619 = vmatprep.subr.mxu0 0.0
      %1620 = vmatpush2.msra.mxu0 0.0
      %1621 = vmatprep.subr.mxu0 0.0
      %1622 = vmatpush2.msra.mxu0 0.0
      %1623 = vmatprep.subr.mxu0 0.0
      %1624 = vmatpush2.msra.mxu0 0.0
      %1625 = vmatprep.subr.mxu0 0.0
      %1626 = vmatpush2.msra.mxu0 0.0
      %1627 = vmatprep.subr.mxu0 0.0
      %1628 = vmatpush2.msra.mxu0 0.0
      %1629 = vmatprep.subr.mxu0 0.0
      %1630 = vmatpush2.msra.mxu0 0.0
      %1631 = vmatprep.subr.mxu0 0.0
      %1632 = vmatpush2.msra.mxu0 0.0
      %1633 = vmatprep.subr.mxu0 0.0
      %1634 = vmatpush2.msra.mxu0 0.0
      %1635 = vmatprep.subr.mxu0 0.0
      %1636 = vmatpush2.msra.mxu0 0.0
      %1637 = vmatprep.mubr.f32.mxu0 0.0
      %1638 = vmatmul.mubr.f32.gmra.mxu0 %v1571
      %v1639 = vpop.f32.mrf.mxu0
      %v1640 = vadd.f32 0.0, %v1639
      %v1641 = vpop.f32.mrf.mxu0
      %1642 = vdwg.mxu0
      %v1644 = vsel %vm1277, %v1274, 0
      %1646 = vmatprep.subr.mxu0 0.0
      %1647 = vmatpush1.msra.mxu0 0.0
      %1648 = vmatprep.subr.mxu0 0.0
      %1649 = vmatpush1.msra.mxu0 0.0
      %1650 = vmatprep.subr.mxu0 0.0
      %1651 = vmatpush1.msra.mxu0 0.0
      %1652 = vmatprep.subr.mxu0 0.0
      %1653 = vmatpush1.msra.mxu0 0.0
      %1654 = vmatprep.subr.mxu0 0.0
      %1655 = vmatpush1.msra.mxu0 0.0
      %1656 = vmatprep.subr.mxu0 0.0
      %1657 = vmatpush1.msra.mxu0 0.0
      %1658 = vmatprep.subr.mxu0 0.0
      %1659 = vmatpush1.msra.mxu0 0.0
      %1660 = vmatprep.subr.mxu0 0.0
      %1661 = vmatpush1.msra.mxu0 0.0
      %1662 = vmatprep.subr.mxu0 0.0
      %1663 = vmatpush1.msra.mxu0 0.0
      %1664 = vmatprep.subr.mxu0 0.0
      %1665 = vmatpush1.msra.mxu0 0.0
      %1666 = vmatprep.subr.mxu0 0.0
      %1667 = vmatpush1.msra.mxu0 0.0
      %1668 = vmatprep.subr.mxu0 0.0
      %1669 = vmatpush1.msra.mxu0 0.0
      %1670 = vmatprep.subr.mxu0 0.0
      %1671 = vmatpush1.msra.mxu0 0.0
      %1672 = vmatprep.subr.mxu0 0.0
      %1673 = vmatpush1.msra.mxu0 0.0
      %1674 = vmatprep.subr.mxu0 0.0
      %1675 = vmatpush1.msra.mxu0 0.0
      %1676 = vmatprep.subr.mxu0 0.0
      %1677 = vmatpush1.msra.mxu0 %v123
      %1678 = vmatprep.subr.mxu0 0.0
      %1679 = vmatpush2.msra.mxu0 0.0
      %1680 = vmatprep.subr.mxu0 0.0
      %1681 = vmatpush2.msra.mxu0 0.0
      %1682 = vmatprep.subr.mxu0 0.0
      %1683 = vmatpush2.msra.mxu0 0.0
      %1684 = vmatprep.subr.mxu0 0.0
      %1685 = vmatpush2.msra.mxu0 0.0
      %1686 = vmatprep.subr.mxu0 0.0
      %1687 = vmatpush2.msra.mxu0 0.0
      %1688 = vmatprep.subr.mxu0 0.0
      %1689 = vmatpush2.msra.mxu0 0.0
      %1690 = vmatprep.subr.mxu0 0.0
      %1691 = vmatpush2.msra.mxu0 0.0
      %1692 = vmatprep.subr.mxu0 0.0
      %1693 = vmatpush2.msra.mxu0 0.0
      %1694 = vmatprep.subr.mxu0 0.0
      %1695 = vmatpush2.msra.mxu0 0.0
      %1696 = vmatprep.subr.mxu0 0.0
      %1697 = vmatpush2.msra.mxu0 0.0
      %1698 = vmatprep.subr.mxu0 0.0
      %1699 = vmatpush2.msra.mxu0 0.0
      %1700 = vmatprep.subr.mxu0 0.0
      %1701 = vmatpush2.msra.mxu0 0.0
      %1702 = vmatprep.subr.mxu0 0.0
      %1703 = vmatpush2.msra.mxu0 0.0
      %1704 = vmatprep.subr.mxu0 0.0
      %1705 = vmatpush2.msra.mxu0 0.0
      %1706 = vmatprep.subr.mxu0 0.0
      %1707 = vmatpush2.msra.mxu0 0.0
      %1708 = vmatprep.subr.mxu0 0.0
      %1709 = vmatpush2.msra.mxu0 0.0
      %1710 = vmatprep.mubr.f32.mxu0 0.0
      %1711 = vmatmul.mubr.f32.gmra.mxu0 %v1644
      %v1712 = vpop.f32.mrf.mxu0
      %v1713 = vadd.f32 0.0, %v1712
      %v1714 = vpop.f32.mrf.mxu0
      %1715 = vdwg.mxu0
      %v1717 = vsel %vm1277, %v1275, 0
      %1719 = vmatprep.subr.mxu0 0.0
      %1720 = vmatpush1.msra.mxu0 0.0
      %1721 = vmatprep.subr.mxu0 0.0
      %1722 = vmatpush1.msra.mxu0 0.0
      %1723 = vmatprep.subr.mxu0 0.0
      %1724 = vmatpush1.msra.mxu0 0.0
      %1725 = vmatprep.subr.mxu0 0.0
      %1726 = vmatpush1.msra.mxu0 0.0
      %1727 = vmatprep.subr.mxu0 0.0
      %1728 = vmatpush1.msra.mxu0 0.0
      %1729 = vmatprep.subr.mxu0 0.0
      %1730 = vmatpush1.msra.mxu0 0.0
      %1731 = vmatprep.subr.mxu0 0.0
      %1732 = vmatpush1.msra.mxu0 0.0
      %1733 = vmatprep.subr.mxu0 0.0
      %1734 = vmatpush1.msra.mxu0 0.0
      %1735 = vmatprep.subr.mxu0 0.0
      %1736 = vmatpush1.msra.mxu0 0.0
      %1737 = vmatprep.subr.mxu0 0.0
      %1738 = vmatpush1.msra.mxu0 0.0
      %1739 = vmatprep.subr.mxu0 0.0
      %1740 = vmatpush1.msra.mxu0 0.0
      %1741 = vmatprep.subr.mxu0 0.0
      %1742 = vmatpush1.msra.mxu0 0.0
      %1743 = vmatprep.subr.mxu0 0.0
      %1744 = vmatpush1.msra.mxu0 0.0
      %1745 = vmatprep.subr.mxu0 0.0
      %1746 = vmatpush1.msra.mxu0 0.0
      %1747 = vmatprep.subr.mxu0 0.0
      %1748 = vmatpush1.msra.mxu0 0.0
      %1749 = vmatprep.subr.mxu0 0.0
      %1750 = vmatpush1.msra.mxu0 %v124
      %1751 = vmatprep.subr.mxu0 0.0
      %1752 = vmatpush2.msra.mxu0 0.0
      %1753 = vmatprep.subr.mxu0 0.0
      %1754 = vmatpush2.msra.mxu0 0.0
      %1755 = vmatprep.subr.mxu0 0.0
      %1756 = vmatpush2.msra.mxu0 0.0
      %1757 = vmatprep.subr.mxu0 0.0
      %1758 = vmatpush2.msra.mxu0 0.0
      %1759 = vmatprep.subr.mxu0 0.0
      %1760 = vmatpush2.msra.mxu0 0.0
      %1761 = vmatprep.subr.mxu0 0.0
      %1762 = vmatpush2.msra.mxu0 0.0
      %1763 = vmatprep.subr.mxu0 0.0
      %1764 = vmatpush2.msra.mxu0 0.0
      %1765 = vmatprep.subr.mxu0 0.0
      %1766 = vmatpush2.msra.mxu0 0.0
      %1767 = vmatprep.subr.mxu0 0.0
      %1768 = vmatpush2.msra.mxu0 0.0
      %1769 = vmatprep.subr.mxu0 0.0
      %1770 = vmatpush2.msra.mxu0 0.0
      %1771 = vmatprep.subr.mxu0 0.0
      %1772 = vmatpush2.msra.mxu0 0.0
      %1773 = vmatprep.subr.mxu0 0.0
      %1774 = vmatpush2.msra.mxu0 0.0
      %1775 = vmatprep.subr.mxu0 0.0
      %1776 = vmatpush2.msra.mxu0 0.0
      %1777 = vmatprep.subr.mxu0 0.0
      %1778 = vmatpush2.msra.mxu0 0.0
      %1779 = vmatprep.subr.mxu0 0.0
      %1780 = vmatpush2.msra.mxu0 0.0
      %1781 = vmatprep.subr.mxu0 0.0
      %1782 = vmatpush2.msra.mxu0 0.0
      %1783 = vmatprep.mubr.f32.mxu0 0.0
      %1784 = vmatmul.mubr.f32.gmra.mxu0 %v1717
      %v1785 = vpop.f32.mrf.mxu0
      %v1786 = vadd.f32 0.0, %v1785
      %v1787 = vpop.f32.mrf.mxu0
      %1788 = vdwg.mxu0
      %v1790 = vsel %vm1277, %v1276, 0
      %1792 = vmatprep.subr.mxu0 0.0
      %1793 = vmatpush1.msra.mxu0 0.0
      %1794 = vmatprep.subr.mxu0 0.0
      %1795 = vmatpush1.msra.mxu0 0.0
      %1796 = vmatprep.subr.mxu0 0.0
      %1797 = vmatpush1.msra.mxu0 0.0
      %1798 = vmatprep.subr.mxu0 0.0
      %1799 = vmatpush1.msra.mxu0 0.0
      %1800 = vmatprep.subr.mxu0 0.0
      %1801 = vmatpush1.msra.mxu0 0.0
      %1802 = vmatprep.subr.mxu0 0.0
      %1803 = vmatpush1.msra.mxu0 0.0
      %1804 = vmatprep.subr.mxu0 0.0
      %1805 = vmatpush1.msra.mxu0 0.0
      %1806 = vmatprep.subr.mxu0 0.0
      %1807 = vmatpush1.msra.mxu0 0.0
      %1808 = vmatprep.subr.mxu0 0.0
      %1809 = vmatpush1.msra.mxu0 0.0
      %1810 = vmatprep.subr.mxu0 0.0
      %1811 = vmatpush1.msra.mxu0 0.0
      %1812 = vmatprep.subr.mxu0 0.0
      %1813 = vmatpush1.msra.mxu0 0.0
      %1814 = vmatprep.subr.mxu0 0.0
      %1815 = vmatpush1.msra.mxu0 0.0
      %1816 = vmatprep.subr.mxu0 0.0
      %1817 = vmatpush1.msra.mxu0 0.0
      %1818 = vmatprep.subr.mxu0 0.0
      %1819 = vmatpush1.msra.mxu0 0.0
      %1820 = vmatprep.subr.mxu0 0.0
      %1821 = vmatpush1.msra.mxu0 0.0
      %1822 = vmatprep.subr.mxu0 0.0
      %1823 = vmatpush1.msra.mxu0 %v125
      %1824 = vmatprep.subr.mxu0 0.0
      %1825 = vmatpush2.msra.mxu0 0.0
      %1826 = vmatprep.subr.mxu0 0.0
      %1827 = vmatpush2.msra.mxu0 0.0
      %1828 = vmatprep.subr.mxu0 0.0
      %1829 = vmatpush2.msra.mxu0 0.0
      %1830 = vmatprep.subr.mxu0 0.0
      %1831 = vmatpush2.msra.mxu0 0.0
      %1832 = vmatprep.subr.mxu0 0.0
      %1833 = vmatpush2.msra.mxu0 0.0
      %1834 = vmatprep.subr.mxu0 0.0
      %1835 = vmatpush2.msra.mxu0 0.0
      %1836 = vmatprep.subr.mxu0 0.0
      %1837 = vmatpush2.msra.mxu0 0.0
      %1838 = vmatprep.subr.mxu0 0.0
      %1839 = vmatpush2.msra.mxu0 0.0
      %1840 = vmatprep.subr.mxu0 0.0
      %1841 = vmatpush2.msra.mxu0 0.0
      %1842 = vmatprep.subr.mxu0 0.0
      %1843 = vmatpush2.msra.mxu0 0.0
      %1844 = vmatprep.subr.mxu0 0.0
      %1845 = vmatpush2.msra.mxu0 0.0
      %1846 = vmatprep.subr.mxu0 0.0
      %1847 = vmatpush2.msra.mxu0 0.0
      %1848 = vmatprep.subr.mxu0 0.0
      %1849 = vmatpush2.msra.mxu0 0.0
      %1850 = vmatprep.subr.mxu0 0.0
      %1851 = vmatpush2.msra.mxu0 0.0
      %1852 = vmatprep.subr.mxu0 0.0
      %1853 = vmatpush2.msra.mxu0 0.0
      %1854 = vmatprep.subr.mxu0 0.0
      %1855 = vmatpush2.msra.mxu0 0.0
      %1856 = vmatprep.mubr.f32.mxu0 0.0
      %1857 = vmatmul.mubr.f32.gmra.mxu0 %v1790
      %v1858 = vpop.f32.mrf.mxu0
      %v1859 = vadd.f32 0.0, %v1858
      %v1860 = vpop.f32.mrf.mxu0
      %1861 = vdwg.mxu0
      %v1862 = vld [vmem:[#allocation7] sm:$0xff]
      %v1863 = vld [vmem:[#allocation7 + $0x8] sm:$0xff]
      %v1864 = vld [vmem:[#allocation7 + $0x10] sm:$0xff]
      %v1865 = vld [vmem:[#allocation7 + $0x18] sm:$0xff]
      %v1866 = vld [vmem:[#allocation7 + $0x20] sm:$0xff]
      %v1867 = vld [vmem:[#allocation7 + $0x28] sm:$0xff]
      %v1868 = vld [vmem:[#allocation7 + $0x30] sm:$0xff]
      %v1869 = vld [vmem:[#allocation7 + $0x38] sm:$0xff]
      %v1870 = vld [vmem:[#allocation7 + $0x40] sm:$0xff]
      %v1871 = vld [vmem:[#allocation7 + $0x48] sm:$0xff]
      %v1872 = vld [vmem:[#allocation7 + $0x50] sm:$0xff]
      %v1873 = vld [vmem:[#allocation7 + $0x58] sm:$0xff]
      %v1874 = vld [vmem:[#allocation7 + $0x60] sm:$0xff]
      %v1875 = vld [vmem:[#allocation7 + $0x68] sm:$0xff]
      %v1876 = vld [vmem:[#allocation7 + $0x70] sm:$0xff]
      %v1877 = vld [vmem:[#allocation7 + $0x78] sm:$0xff]
      %v1878 = vld [vmem:[#allocation8] sm:$0xff]
      %v1879 = vld [vmem:[#allocation8 + $0x8] sm:$0xff]
      %v1880 = vld [vmem:[#allocation8 + $0x10] sm:$0xff]
      %v1881 = vld [vmem:[#allocation8 + $0x18] sm:$0xff]
      %v1882 = vld [vmem:[#allocation8 + $0x20] sm:$0xff]
      %v1883 = vld [vmem:[#allocation8 + $0x28] sm:$0xff]
      %v1884 = vld [vmem:[#allocation8 + $0x30] sm:$0xff]
      %v1885 = vld [vmem:[#allocation8 + $0x38] sm:$0xff]
      %v1886 = vld [vmem:[#allocation8 + $0x40] sm:$0xff]
      %v1887 = vld [vmem:[#allocation8 + $0x48] sm:$0xff]
      %v1888 = vld [vmem:[#allocation8 + $0x50] sm:$0xff]
      %v1889 = vld [vmem:[#allocation8 + $0x58] sm:$0xff]
      %v1890 = vld [vmem:[#allocation8 + $0x60] sm:$0xff]
      %v1891 = vld [vmem:[#allocation8 + $0x68] sm:$0xff]
      %v1892 = vld [vmem:[#allocation8 + $0x70] sm:$0xff]
      %v1893 = vld [vmem:[#allocation8 + $0x78] sm:$0xff]
      %v1902 = vrot.slane %v1421, 7
      %vm1903 = vcmask 1041409
      %v1904 = vsel %vm1903, %v1902, %v1348
      %v1905 = vrot.slane %v1494, 6
      %vm1906 = vcmask 1042434
      %v1907 = vsel %vm1906, %v1905, %v1904
      %v1908 = vrot.slane %v1567, 5
      %vm1909 = vcmask 1043459
      %v1910 = vsel %vm1909, %v1908, %v1907
      %v1911 = vrot.slane %v1640, 4
      %vm1912 = vcmask 1044484
      %v1913 = vsel %vm1912, %v1911, %v1910
      %v1914 = vrot.slane %v1713, 3
      %vm1915 = vcmask 1045509
      %v1916 = vsel %vm1915, %v1914, %v1913
      %v1917 = vrot.slane %v1786, 2
      %vm1918 = vcmask 1046534
      %v1919 = vsel %vm1918, %v1917, %v1916
      %v1920 = vrot.slane %v1859, 1
      %vm1921 = vcmask 1047559
      %v1922 = vsel %vm1921, %v1920, %v1919
      %1924 = vmatprep.subr.mxu0 0.0
      %1925 = vmatpush1.msra.mxu0 %v1893
      %1926 = vmatprep.subr.mxu0 0.0
      %1927 = vmatpush1.msra.mxu0 %v1892
      %1928 = vmatprep.subr.mxu0 0.0
      %1929 = vmatpush1.msra.mxu0 %v1891
      %1930 = vmatprep.subr.mxu0 0.0
      %1931 = vmatpush1.msra.mxu0 %v1890
      %1932 = vmatprep.subr.mxu0 0.0
      %1933 = vmatpush1.msra.mxu0 %v1889
      %1934 = vmatprep.subr.mxu0 0.0
      %1935 = vmatpush1.msra.mxu0 %v1888
      %1936 = vmatprep.subr.mxu0 0.0
      %1937 = vmatpush1.msra.mxu0 %v1887
      %1938 = vmatprep.subr.mxu0 0.0
      %1939 = vmatpush1.msra.mxu0 %v1886
      %1940 = vmatprep.subr.mxu0 0.0
      %1941 = vmatpush1.msra.mxu0 %v1885
      %1942 = vmatprep.subr.mxu0 0.0
      %1943 = vmatpush1.msra.mxu0 %v1884
      %1944 = vmatprep.subr.mxu0 0.0
      %1945 = vmatpush1.msra.mxu0 %v1883
      %1946 = vmatprep.subr.mxu0 0.0
      %1947 = vmatpush1.msra.mxu0 %v1882
      %1948 = vmatprep.subr.mxu0 0.0
      %1949 = vmatpush1.msra.mxu0 %v1881
      %1950 = vmatprep.subr.mxu0 0.0
      %1951 = vmatpush1.msra.mxu0 %v1880
      %1952 = vmatprep.subr.mxu0 0.0
      %1953 = vmatpush1.msra.mxu0 %v1879
      %1954 = vmatprep.subr.mxu0 0.0
      %1955 = vmatpush1.msra.mxu0 %v1878
      %1956 = vmatprep.subr.mxu0 0.0
      %1957 = vmatpush2.msra.mxu0 0.0
      %1958 = vmatprep.subr.mxu0 0.0
      %1959 = vmatpush2.msra.mxu0 0.0
      %1960 = vmatprep.subr.mxu0 0.0
      %1961 = vmatpush2.msra.mxu0 0.0
      %1962 = vmatprep.subr.mxu0 0.0
      %1963 = vmatpush2.msra.mxu0 0.0
      %1964 = vmatprep.subr.mxu0 0.0
      %1965 = vmatpush2.msra.mxu0 0.0
      %1966 = vmatprep.subr.mxu0 0.0
      %1967 = vmatpush2.msra.mxu0 0.0
      %1968 = vmatprep.subr.mxu0 0.0
      %1969 = vmatpush2.msra.mxu0 0.0
      %1970 = vmatprep.subr.mxu0 0.0
      %1971 = vmatpush2.msra.mxu0 0.0
      %1972 = vmatprep.subr.mxu0 0.0
      %1973 = vmatpush2.msra.mxu0 0.0
      %1974 = vmatprep.subr.mxu0 0.0
      %1975 = vmatpush2.msra.mxu0 0.0
      %1976 = vmatprep.subr.mxu0 0.0
      %1977 = vmatpush2.msra.mxu0 0.0
      %1978 = vmatprep.subr.mxu0 0.0
      %1979 = vmatpush2.msra.mxu0 0.0
      %1980 = vmatprep.subr.mxu0 0.0
      %1981 = vmatpush2.msra.mxu0 0.0
      %1982 = vmatprep.subr.mxu0 0.0
      %1983 = vmatpush2.msra.mxu0 0.0
      %1984 = vmatprep.subr.mxu0 0.0
      %1985 = vmatpush2.msra.mxu0 0.0
      %1986 = vmatprep.subr.mxu0 0.0
      %1987 = vmatpush2.msra.mxu0 0.0
      %1988 = vmatprep.mubr.f32.mxu0 0.0
      %1989 = vmatmul.mubr.f32.gmra.mxu0 %v1922
      %v1990 = vpop.f32.mrf.mxu0
      %v1991 = vadd.f32 0.0, %v1990
      %v1992 = vpop.f32.mrf.mxu0
      %1993 = vdwg.mxu0
      %1994 = vmatprep.subr.mxu0 0.0
      %1995 = vmatpush1.msra.mxu0 %v1877
      %1996 = vmatprep.subr.mxu0 0.0
      %1997 = vmatpush1.msra.mxu0 %v1876
      %1998 = vmatprep.subr.mxu0 0.0
      %1999 = vmatpush1.msra.mxu0 %v1875
      %2000 = vmatprep.subr.mxu0 0.0
      %2001 = vmatpush1.msra.mxu0 %v1874
      %2002 = vmatprep.subr.mxu0 0.0
      %2003 = vmatpush1.msra.mxu0 %v1873
      %2004 = vmatprep.subr.mxu0 0.0
      %2005 = vmatpush1.msra.mxu0 %v1872
      %2006 = vmatprep.subr.mxu0 0.0
      %2007 = vmatpush1.msra.mxu0 %v1871
      %2008 = vmatprep.subr.mxu0 0.0
      %2009 = vmatpush1.msra.mxu0 %v1870
      %2010 = vmatprep.subr.mxu0 0.0
      %2011 = vmatpush1.msra.mxu0 %v1869
      %2012 = vmatprep.subr.mxu0 0.0
      %2013 = vmatpush1.msra.mxu0 %v1868
      %2014 = vmatprep.subr.mxu0 0.0
      %2015 = vmatpush1.msra.mxu0 %v1867
      %2016 = vmatprep.subr.mxu0 0.0
      %2017 = vmatpush1.msra.mxu0 %v1866
      %2018 = vmatprep.subr.mxu0 0.0
      %2019 = vmatpush1.msra.mxu0 %v1865
      %2020 = vmatprep.subr.mxu0 0.0
      %2021 = vmatpush1.msra.mxu0 %v1864
      %2022 = vmatprep.subr.mxu0 0.0
      %2023 = vmatpush1.msra.mxu0 %v1863
      %2024 = vmatprep.subr.mxu0 0.0
      %2025 = vmatpush1.msra.mxu0 %v1862
      %2026 = vmatprep.subr.mxu0 0.0
      %2027 = vmatpush2.msra.mxu0 0.0
      %2028 = vmatprep.subr.mxu0 0.0
      %2029 = vmatpush2.msra.mxu0 0.0
      %2030 = vmatprep.subr.mxu0 0.0
      %2031 = vmatpush2.msra.mxu0 0.0
      %2032 = vmatprep.subr.mxu0 0.0
      %2033 = vmatpush2.msra.mxu0 0.0
      %2034 = vmatprep.subr.mxu0 0.0
      %2035 = vmatpush2.msra.mxu0 0.0
      %2036 = vmatprep.subr.mxu0 0.0
      %2037 = vmatpush2.msra.mxu0 0.0
      %2038 = vmatprep.subr.mxu0 0.0
      %2039 = vmatpush2.msra.mxu0 0.0
      %2040 = vmatprep.subr.mxu0 0.0
      %2041 = vmatpush2.msra.mxu0 0.0
      %2042 = vmatprep.subr.mxu0 0.0
      %2043 = vmatpush2.msra.mxu0 0.0
      %2044 = vmatprep.subr.mxu0 0.0
      %2045 = vmatpush2.msra.mxu0 0.0
      %2046 = vmatprep.subr.mxu0 0.0
      %2047 = vmatpush2.msra.mxu0 0.0
      %2048 = vmatprep.subr.mxu0 0.0
      %2049 = vmatpush2.msra.mxu0 0.0
      %2050 = vmatprep.subr.mxu0 0.0
      %2051 = vmatpush2.msra.mxu0 0.0
      %2052 = vmatprep.subr.mxu0 0.0
      %2053 = vmatpush2.msra.mxu0 0.0
      %2054 = vmatprep.subr.mxu0 0.0
      %2055 = vmatpush2.msra.mxu0 0.0
      %2056 = vmatprep.subr.mxu0 0.0
      %2057 = vmatpush2.msra.mxu0 0.0
      %2058 = vmatprep.mubr.f32.mxu0 0.0
      %2059 = vmatmul.mubr.f32.gmra.mxu0 %v558
      %v2060 = vpop.f32.mrf.mxu0
      %v2061 = vadd.f32 %v1991, %v2060
      %v2062 = vpop.f32.mrf.mxu0
      %2063 = vdwg.mxu0
      %v2064 = vld [vmem:[%s9] sm:$0x1]
      %v2066 = vlaneseq
      %v2067 = vshrl.u32 %v2066, 7
      %v2068 = vsub.s32 0, %v2067
      %v2069 = vrot.slane %v2064, %v2068
      %v2071 = vadd.f32 %v2061, %v2069
      %v2072 = vtanh.pop %v2071
      %2073 = vst [vmem:[#allocation2] sm:$0xff] %v2072
      %2074 = vst [vmem:[%s13] sm:$0xff] %v558
    $region73: #{luong_attn_decoder_step.2} parent=1 // pred_fallthru
      _
    %v2075 = vld [vmem:[#allocation2] sm:$0xff]
    %v2076 = vpack.c.bf16 %v2075, %v2075
    %v2077 = vld [vmem:[#allocation10] sm:$0xf]
    %v2078 = vld [vmem:[#allocation10 + $0x4] sm:$0xf]
    %v2079 = vld [vmem:[#allocation10 + $0x8] sm:$0xf]
    %v2080 = vld [vmem:[#allocation10 + $0xc] sm:$0xf]
    %v2081 = vld [vmem:[#allocation10 + $0x10] sm:$0xf]
    %v2082 = vld [vmem:[#allocation10 + $0x14] sm:$0xf]
    %v2083 = vld [vmem:[#allocation10 + $0x18] sm:$0xf]
    %v2084 = vld [vmem:[#allocation10 + $0x1c] sm:$0xf]
    %v2085 = vld [vmem:[#allocation10 + $0x20] sm:$0xf]
    %v2086 = vld [vmem:[#allocation10 + $0x24] sm:$0xf]
    %v2087 = vld [vmem:[#allocation10 + $0x28] sm:$0xf]
    %v2088 = vld [vmem:[#allocation10 + $0x2c] sm:$0xf]
    %v2089 = vld [vmem:[#allocation10 + $0x30] sm:$0xf]
    %v2090 = vld [vmem:[#allocation10 + $0x34] sm:$0xf]
    %v2091 = vld [vmem:[#allocation10 + $0x38] sm:$0xf]
    %v2092 = vld [vmem:[#allocation10 + $0x3c] sm:$0xf]
    %v2093 = vld [vmem:[%s11] sm:$0x1]
    %v2095 = vlaneseq
    %v2096 = vshrl.u32 %v2095, 7
    %v2097 = vsub.s32 0, %v2096
    %v2098 = vrot.slane %v2093, %v2097
    %v2116 = vunpack.c.l.b16 %v2077
    %v2117 = vunpack.c.l.b16 %v2078
    %v2118 = vunpack.c.l.b16 %v2079
    %v2119 = vunpack.c.l.b16 %v2080
    %v2120 = vunpack.c.l.b16 %v2081
    %v2121 = vunpack.c.l.b16 %v2082
    %v2122 = vunpack.c.l.b16 %v2083
    %v2123 = vunpack.c.l.b16 %v2084
    %v2124 = vunpack.c.l.b16 %v2085
    %v2125 = vunpack.c.l.b16 %v2086
    %v2126 = vunpack.c.l.b16 %v2087
    %v2127 = vunpack.c.l.b16 %v2088
    %v2128 = vunpack.c.l.b16 %v2089
    %v2129 = vunpack.c.l.b16 %v2090
    %v2130 = vunpack.c.l.b16 %v2091
    %v2131 = vunpack.c.l.b16 %v2092
    %v2132 = vpack.c.b16 %v2117, %v2116
    %v2133 = vpack.c.b16 %v2119, %v2118
    %v2134 = vpack.c.b16 %v2121, %v2120
    %v2135 = vpack.c.b16 %v2123, %v2122
    %v2136 = vpack.c.b16 %v2125, %v2124
    %v2137 = vpack.c.b16 %v2127, %v2126
    %v2138 = vpack.c.b16 %v2129, %v2128
    %v2139 = vpack.c.b16 %v2131, %v2130
    %2148 = vmatprep.subr.bf16.mxu0 0
    %2149 = vmatpush1.bf16.msra.mxu0 %v2139
    %2150 = vmatprep.subr.bf16.mxu0 0
    %2151 = vmatpush1.bf16.msra.mxu0 %v2138
    %2152 = vmatprep.subr.bf16.mxu0 0
    %2153 = vmatpush1.bf16.msra.mxu0 %v2137
    %2154 = vmatprep.subr.bf16.mxu0 0
    %2155 = vmatpush1.bf16.msra.mxu0 %v2136
    %2156 = vmatprep.subr.bf16.mxu0 0
    %2157 = vmatpush1.bf16.msra.mxu0 %v2135
    %2158 = vmatprep.subr.bf16.mxu0 0
    %2159 = vmatpush1.bf16.msra.mxu0 %v2134
    %2160 = vmatprep.subr.bf16.mxu0 0
    %2161 = vmatpush1.bf16.msra.mxu0 %v2133
    %2162 = vmatprep.subr.bf16.mxu0 0
    %2163 = vmatpush1.bf16.msra.mxu0 %v2132
    %2164 = vmatprep.subr.bf16.mxu0 0
    %2165 = vmatpush2.bf16.msra.mxu0 0
    %2166 = vmatprep.subr.bf16.mxu0 0
    %2167 = vmatpush2.bf16.msra.mxu0 0
    %2168 = vmatprep.subr.bf16.mxu0 0
    %2169 = vmatpush2.bf16.msra.mxu0 0
    %2170 = vmatprep.subr.bf16.mxu0 0
    %2171 = vmatpush2.bf16.msra.mxu0 0
    %2172 = vmatprep.subr.bf16.mxu0 0
    %2173 = vmatpush2.bf16.msra.mxu0 0
    %2174 = vmatprep.subr.bf16.mxu0 0
    %2175 = vmatpush2.bf16.msra.mxu0 0
    %2176 = vmatprep.subr.bf16.mxu0 0
    %2177 = vmatpush2.bf16.msra.mxu0 0
    %2178 = vmatprep.subr.bf16.mxu0 0
    %2179 = vmatpush2.bf16.msra.mxu0 0
    %2180 = vmatprep.mubr.bf16.mxu0 0
    %2181 = vmatmul.mubr.bf16.gmra.mxu0 %v2076
    %v2182 = vpop.f32.mrf.mxu0
    %v2183 = vadd.f32 %v2098, %v2182
    %v2184 = vpop.f32.mrf.mxu0
    %v2185 = vpop.f32.mrf.mxu0
    %v2186 = vpop.f32.mrf.mxu0
    %2187 = vdwg.mxu0
    %2188 = vst [vmem:[%s12] sm:$0xff] %v2183
    // Predicated region
    $region74: #{luong_attn_decoder_step.2} parent=1 // pred_check
      _
    $region75: #{luong_attn_decoder_step.2} parent=1 // pred_check_branch
      %2190 = sbr.rel (0) target = $region77
    $region76: #{luong_attn_decoder_step.2} parent=1 // pred_region
      _
    $region77: #{luong_attn_decoder_step.2} parent=1 // pred_fallthru
      _
    // Predicated region
    $region78: #{luong_attn_decoder_step.2} parent=1 // pred_check
      _
    $region79: #{luong_attn_decoder_step.2} parent=1 // pred_check_branch
      %2192 = sbr.rel (0) target = $region81
    $region80: #{luong_attn_decoder_step.2} parent=1 // pred_region
      _
    $region81: #{luong_attn_decoder_step.2} parent=1 // pred_fallthru
      _
    // Predicated region
    $region82: #{luong_attn_decoder_step.2} parent=1 // pred_check
      _
    $region83: #{luong_attn_decoder_step.2} parent=1 // pred_check_branch
      %2194 = sbr.rel (0) target = $region85
    $region84: #{luong_attn_decoder_step.2} parent=1 // pred_region
      _
    $region85: #{luong_attn_decoder_step.2} parent=1 // pred_fallthru
      _
    // Predicated region
    $region86: #{luong_attn_decoder_step.2} parent=1 // pred_check
      _
    $region87: #{luong_attn_decoder_step.2} parent=1 // pred_check_branch
      %2196 = sbr.rel (0) target = $region89
    $region88: #{luong_attn_decoder_step.2} parent=1 // pred_region
      _
    $region89: #{luong_attn_decoder_step.2} parent=1 // pred_fallthru
      _
    %2197 = vsyncpa [#allocation4], 1
    %2198 = vsyncpa [#allocation6], 1
    %2199 = vsyncpa [#allocation9], 1

</llo_original>
